<compile_context>
chip_gen: v6e
topology: v6e:2x2x1
jax: 0.10.0
libtpu: 0.0.40
codegen_flags: <defaults>
</compile_context>

<pallas_src>
import functools
import math

import jax
import jax.numpy as jnp
from jax.experimental import pallas as pl
from jax.experimental.pallas import tpu as pltpu

EPS = 1e-5
MAX_M_TILE = 1024  # lanes per output tile (multiple of 128)


# ----------------------------------------------------------------------------
# Fused conv(as matmul) + batchnorm(batch stats) + relu Pallas kernel
# ----------------------------------------------------------------------------
def _conv_bn_relu_kernel(m_true, w_ref, p_ref, g_ref, b_ref, o_ref,
                         sum_ref, ssq_ref, scale_ref, shift_ref):
    """One grid step. Grid = (2, num_m_tiles): axis 0 = pass (0 stats, 1 norm),
    axis 1 tiles M = N*Ho*Wo (the lane axis of Y^T).

      w_ref  : [Cout, K]  bf16   transposed conv weight (resident across grid)
      p_ref  : [K, Mt]    bf16   im2col patches^T tile
      g_ref  : [Cout, 1]  f32    BN gamma
      b_ref  : [Cout, 1]  f32    BN beta
      o_ref  : [Cout, Mt] f32    output tile (written only in pass 1)
      scratch: 4 x [Cout, 1] f32 persistent per-channel accumulators
    """
    pass_id = pl.program_id(0)
    m_idx = pl.program_id(1)
    n_m = pl.num_programs(1)

    # Conv hot path: bf16 MXU matmul with f32 accumulation. Recomputed in both
    # passes (cheaper than staging Y^T through HBM for these small K).
    y = jnp.dot(w_ref[...], p_ref[...], preferred_element_type=jnp.float32)

    @pl.when(pass_id == 0)
    def _stats_pass():
        @pl.when(m_idx == 0)
        def _init():
            sum_ref[...] = jnp.zeros_like(sum_ref)
            ssq_ref[...] = jnp.zeros_like(ssq_ref)

        sum_ref[...] += jnp.sum(y, axis=1, keepdims=True)
        ssq_ref[...] += jnp.sum(y * y, axis=1, keepdims=True)

        @pl.when(m_idx == n_m - 1)
        def _finalize():
            inv_m = jnp.float32(1.0 / m_true)          # true M (ignores padding)
            mean = sum_ref[...] * inv_m
            var = jnp.maximum(ssq_ref[...] * inv_m - mean * mean, 0.0)
            scale = g_ref[...] * jax.lax.rsqrt(var + EPS)
            scale_ref[...] = scale
            shift_ref[...] = b_ref[...] - scale * mean

    @pl.when(pass_id == 1)
    def _normalize_pass():
        # Folded BN affine: single per-element FMA, then ReLU.
        o_ref[...] = jnp.maximum(y * scale_ref[...] + shift_ref[...], 0.0)


def conv_bn_relu(w_t, patches_t, gamma, beta, m_true):
    """Y^T = relu(BN(W^T @ patches^T)) with training-mode batch statistics."""
    cout, kdim = w_t.shape
    _, m = patches_t.shape

    if m <= MAX_M_TILE:
        mt, m_pad = m, m                    # single full-extent tile
    else:
        mt = MAX_M_TILE
        m_pad = pl.cdiv(m, mt) * mt
        patches_t = jnp.pad(patches_t, ((0, 0), (0, m_pad - m)))
    n_m = m_pad // mt

    flops = 2 * 2 * cout * kdim * m_pad                 # matmul in both passes
    bytes_accessed = (2 * kdim * m_pad * 2              # patches^T bf16, read x2
                      + cout * kdim * 2                 # weights bf16
                      + cout * m_pad * 4)               # output f32

    out = pl.pallas_call(
        functools.partial(_conv_bn_relu_kernel, float(m_true)),
        out_shape=jax.ShapeDtypeStruct((cout, m_pad), jnp.float32),
        grid_spec=pltpu.PrefetchScalarGridSpec(
            num_scalar_prefetch=0,
            grid=(2, n_m),                               # (pass, M tile)
            in_specs=[
                pl.BlockSpec((cout, kdim), lambda p, i: (0, 0)),
                pl.BlockSpec((kdim, mt), lambda p, i: (0, i)),
                pl.BlockSpec((cout, 1), lambda p, i: (0, 0)),
                pl.BlockSpec((cout, 1), lambda p, i: (0, 0)),
            ],
            # pass 0: output block index pinned to 0 (no writeback of unwritten
            # data during the stats pass); pass 1: walk lane-dense M tiles.
            out_specs=pl.BlockSpec((cout, mt), lambda p, i: (0, i * p)),
            scratch_shapes=[pltpu.VMEM((cout, 1), jnp.float32)] * 4,
        ),
        compiler_params=pltpu.CompilerParams(
            # Both axes carry sequential state (stats scratch, pass ordering),
            # so they must stay "arbitrary".
            dimension_semantics=("arbitrary", "arbitrary"),
            vmem_limit_bytes=32 * 1024 * 1024,           # safe on v7x's 64 MiB
        ),
        cost_estimate=pl.CostEstimate(
            flops=flops, transcendentals=cout, bytes_accessed=bytes_accessed),
    )(w_t, patches_t, gamma, beta)

    return out[:, :m] if m_pad != m else out


# ----------------------------------------------------------------------------
# Glue: transposed im2col (zero-FLOP data movement)
# ----------------------------------------------------------------------------
def im2col_t(x_cnhw, k=3, stride=2, pad=1):
    """[C, N, H, W] -> patches^T [k*k*C, N*Ho*Wo] (K on sublanes, M on lanes)."""
    c, n, h, w = x_cnhw.shape
    ho = (h + 2 * pad - k) // stride + 1
    wo = (w + 2 * pad - k) // stride + 1
    xp = jnp.pad(x_cnhw, ((0, 0), (0, 0), (pad, pad), (pad, pad)))
    taps = []
    for kh in range(k):
        for kw in range(k):
            taps.append(xp[:, :, kh:kh + stride * ho:stride,
                           kw:kw + stride * wo:stride])
    patches_t = jnp.concatenate(taps, axis=0)            # [(kh,kw)*C, N, Ho, Wo]
    return patches_t.reshape(k * k * c, n * ho * wo), n, ho, wo


# ----------------------------------------------------------------------------
# Parameter init (deterministic, shapes from the PyTorch module __init__)
# ----------------------------------------------------------------------------
def init_params(key):
    """Weights stored pre-transposed as bf16 [Cout, 9*Cin]; BN gamma/beta f32.

    The Conv2d bias is intentionally dropped: under training-mode BatchNorm it
    is exactly cancelled by the mean subtraction (forward output unchanged).
    """
    params = []
    for cin, cout in ((3, 16), (16, 32), (32, 64)):
        key, kw = jax.random.split(key)
        bound = 1.0 / math.sqrt(cin * 9)
        w = jax.random.uniform(kw, (3, 3, cin, cout), minval=-bound,
                               maxval=bound, dtype=jnp.float32)
        w_t = jnp.transpose(w, (3, 0, 1, 2)).reshape(cout, 9 * cin)  # (kh,kw,cin)
        params.append((w_t.astype(jnp.bfloat16),
                       jnp.ones((cout, 1), jnp.float32),     # BN gamma
                       jnp.zeros((cout, 1), jnp.float32)))   # BN beta
    return params


# ----------------------------------------------------------------------------
# Forward pass: NCHW in, NCHW out (matches PyTorch SpecEncoder.forward)
# ----------------------------------------------------------------------------
@jax.jit
def spec_encoder_forward(x_nchw, params):
    x = jnp.transpose(x_nchw, (1, 0, 2, 3))              # NCHW -> [C, N, H, W]
    for (w_t, gamma, beta) in params:
        patches_t, n, ho, wo = im2col_t(x, k=3, stride=2, pad=1)
        y = conv_bn_relu(w_t, patches_t.astype(jnp.bfloat16), gamma, beta,
                         n * ho * wo)
        x = y.reshape(w_t.shape[0], n, ho, wo)
    return jnp.transpose(x, (1, 0, 2, 3))                # [C, N, H, W] -> NCHW


# ----------------------------------------------------------------------------
# Pure-JAX reference (for a loose self-check; f32 conv, same bf16 weights)
# ----------------------------------------------------------------------------
def _reference_forward(x_nchw, params):
    x = x_nchw
    for (w_t, gamma, beta) in params:
        cout, kdim = w_t.shape
        cin = kdim // 9
        w = w_t.astype(jnp.float32).reshape(cout, 3, 3, cin).transpose(0, 3, 1, 2)
        y = jax.lax.conv_general_dilated(
            x, w, window_strides=(2, 2), padding=((1, 1), (1, 1)),
            dimension_numbers=("NCHW", "OIHW", "NCHW"))
        mean = jnp.mean(y, axis=(0, 2, 3), keepdims=True)
        var = jnp.mean((y - mean) ** 2, axis=(0, 2, 3), keepdims=True)
        yhat = (y - mean) * jax.lax.rsqrt(var + EPS)
        g = gamma.reshape(1, cout, 1, 1)
        b = beta.reshape(1, cout, 1, 1)
        x = jnp.maximum(g * yhat + b, 0.0)
    return x


if __name__ == "__main__":
    key = jax.random.PRNGKey(0)
    kx, kp = jax.random.split(key)
    # NCHW, 3 input channels (conv1); spatial 16 -> 8 -> 4 -> 2
    x = jax.random.normal(kx, (2, 3, 16, 16), dtype=jnp.float32)
    params = init_params(kp)

    out = spec_encoder_forward(x, params)
    out = jax.block_until_ready(out)

    assert out.shape == (2, 64, 2, 2), out.shape
    assert bool(jnp.all(jnp.isfinite(out)))

    # Loose tolerance: kernel uses bf16 matmul operands, reference uses f32.
    ref = _reference_forward(x, params)
    assert jnp.allclose(out, ref, rtol=1e-1, atol=1e-1), \
        float(jnp.max(jnp.abs(out - ref)))

    print("KERNEL_OK")
</pallas_src>

<mosaic_0001>
module attributes {stable_mosaic.version = 11 : i64} {
  func.func @_conv_bn_relu_kernel(%arg0: i32, %arg1: i32, %arg2: memref<16x27xbf16, #tpu.memory_space<vmem>>, %arg3: memref<27x128xbf16, #tpu.memory_space<vmem>>, %arg4: memref<16x1xf32, #tpu.memory_space<vmem>>, %arg5: memref<16x1xf32, #tpu.memory_space<vmem>>, %arg6: memref<16x128xf32, #tpu.memory_space<vmem>>, %arg7: memref<16x1xf32, #tpu.memory_space<vmem>>, %arg8: memref<16x1xf32, #tpu.memory_space<vmem>>, %arg9: memref<16x1xf32, #tpu.memory_space<vmem>>, %arg10: memref<16x1xf32, #tpu.memory_space<vmem>>) attributes {dimension_semantics = [#tpu.dimension_semantics<arbitrary>, #tpu.dimension_semantics<arbitrary>], iteration_bounds = array<i64: 2, 1>, scalar_prefetch = 0 : i64, scratch_operands = 4 : i64, tpu.core_type = #tpu.core_type<tc>, window_params = [{pipeline_mode = #tpu.pipeline_mode<synchronous>, transform_indices = @transform_0, window_bounds = array<i64: 16, 27>}, {transform_indices = @transform_1, window_bounds = array<i64: 27, 128>}, {pipeline_mode = #tpu.pipeline_mode<synchronous>, transform_indices = @transform_2, window_bounds = array<i64: 16, 1>}, {pipeline_mode = #tpu.pipeline_mode<synchronous>, transform_indices = @transform_3, window_bounds = array<i64: 16, 1>}, {transform_indices = @transform_4, window_bounds = array<i64: 16, 128>}]} {
    %c0 = arith.constant 0 : index
    %c0_0 = arith.constant 0 : index
    %0 = vector.load %arg2[%c0, %c0_0] : memref<16x27xbf16, #tpu.memory_space<vmem>>, vector<16x27xbf16>
    %c0_1 = arith.constant 0 : index
    %c0_2 = arith.constant 0 : index
    %1 = vector.load %arg3[%c0_1, %c0_2] : memref<27x128xbf16, #tpu.memory_space<vmem>>, vector<27x128xbf16>
    %cst = arith.constant dense<0.000000e+00> : vector<16x128xf32>
    %2 = tpu.matmul %0, %1, %cst {dimension_numbers = #tpu.dot_dimension_numbers<[1], [0], [0], [1], [0, 0, 1, 1], [], []>} : vector<16x27xbf16>, vector<27x128xbf16>, vector<16x128xf32> -> vector<16x128xf32>
    %c0_i32 = arith.constant 0 : i32
    %3 = arith.cmpi eq, %arg0, %c0_i32 : i32
    %4 = arith.extui %3 : i1 to i32
    %c0_i32_3 = arith.constant 0 : i32
    %5 = arith.cmpi ne, %4, %c0_i32_3 : i32
    scf.if %5 {
      %c0_i32_5 = arith.constant 0 : i32
      %9 = arith.cmpi eq, %arg1, %c0_i32_5 : i32
      %10 = arith.extui %9 : i1 to i32
      %c0_i32_6 = arith.constant 0 : i32
      %11 = arith.cmpi ne, %10, %c0_i32_6 : i32
      scf.if %11 {
        %cst_19 = arith.constant 0.000000e+00 : f32
        %26 = vector.broadcast %cst_19 : f32 to vector<16x1xf32>
        %c0_20 = arith.constant 0 : index
        %c0_21 = arith.constant 0 : index
        %27 = vector.load %arg7[%c0_20, %c0_21] : memref<16x1xf32, #tpu.memory_space<vmem>>, vector<16x1xf32>
        tpu.vector_store %arg7[%c0_20, %c0_21], %26 {strides = array<i32>} : memref<16x1xf32, #tpu.memory_space<vmem>>, vector<16x1xf32>,
        %cst_22 = arith.constant 0.000000e+00 : f32
        %28 = vector.broadcast %cst_22 : f32 to vector<16x1xf32>
        %c0_23 = arith.constant 0 : index
        %c0_24 = arith.constant 0 : index
        %29 = vector.load %arg8[%c0_23, %c0_24] : memref<16x1xf32, #tpu.memory_space<vmem>>, vector<16x1xf32>
        tpu.vector_store %arg8[%c0_23, %c0_24], %28 {strides = array<i32>} : memref<16x1xf32, #tpu.memory_space<vmem>>, vector<16x1xf32>,
      } else {
      }
      %c0_7 = arith.constant 0 : index
      %c0_8 = arith.constant 0 : index
      %12 = vector.load %arg7[%c0_7, %c0_8] : memref<16x1xf32, #tpu.memory_space<vmem>>, vector<16x1xf32>
      %cst_9 = arith.constant dense<0.000000e+00> : vector<16xf32>
      %13 = vector.multi_reduction <add>, %2, %cst_9 [1] : vector<16x128xf32> to vector<16xf32>
      %14 = vector.shape_cast %13 : vector<16xf32> to vector<16x1xf32>
      %15 = arith.addf %12, %14 : vector<16x1xf32>
      %c0_10 = arith.constant 0 : index
      %c0_11 = arith.constant 0 : index
      %16 = vector.load %arg7[%c0_10, %c0_11] : memref<16x1xf32, #tpu.memory_space<vmem>>, vector<16x1xf32>
      tpu.vector_store %arg7[%c0_10, %c0_11], %15 {strides = array<i32>} : memref<16x1xf32, #tpu.memory_space<vmem>>, vector<16x1xf32>,
      %c0_12 = arith.constant 0 : index
      %c0_13 = arith.constant 0 : index
      %17 = vector.load %arg8[%c0_12, %c0_13] : memref<16x1xf32, #tpu.memory_space<vmem>>, vector<16x1xf32>
      %18 = arith.mulf %2, %2 : vector<16x128xf32>
      %cst_14 = arith.constant dense<0.000000e+00> : vector<16xf32>
      %19 = vector.multi_reduction <add>, %18, %cst_14 [1] : vector<16x128xf32> to vector<16xf32>
      %20 = vector.shape_cast %19 : vector<16xf32> to vector<16x1xf32>
      %21 = arith.addf %17, %20 : vector<16x1xf32>
      %c0_15 = arith.constant 0 : index
      %c0_16 = arith.constant 0 : index
      %22 = vector.load %arg8[%c0_15, %c0_16] : memref<16x1xf32, #tpu.memory_space<vmem>>, vector<16x1xf32>
      tpu.vector_store %arg8[%c0_15, %c0_16], %21 {strides = array<i32>} : memref<16x1xf32, #tpu.memory_space<vmem>>, vector<16x1xf32>,
      %c0_i32_17 = arith.constant 0 : i32
      %23 = arith.cmpi eq, %arg1, %c0_i32_17 : i32
      %24 = arith.extui %23 : i1 to i32
      %c0_i32_18 = arith.constant 0 : i32
      %25 = arith.cmpi ne, %24, %c0_i32_18 : i32
      scf.if %25 {
        %c0_19 = arith.constant 0 : index
        %c0_20 = arith.constant 0 : index
        %26 = vector.load %arg7[%c0_19, %c0_20] : memref<16x1xf32, #tpu.memory_space<vmem>>, vector<16x1xf32>
        %cst_21 = arith.constant 7.812500e-03 : f32
        %27 = vector.broadcast %cst_21 : f32 to vector<16x1xf32>
        %28 = arith.mulf %26, %27 : vector<16x1xf32>
        %c0_22 = arith.constant 0 : index
        %c0_23 = arith.constant 0 : index
        %29 = vector.load %arg8[%c0_22, %c0_23] : memref<16x1xf32, #tpu.memory_space<vmem>>, vector<16x1xf32>
        %cst_24 = arith.constant 7.812500e-03 : f32
        %30 = vector.broadcast %cst_24 : f32 to vector<16x1xf32>
        %31 = arith.mulf %29, %30 : vector<16x1xf32>
        %32 = arith.mulf %28, %28 : vector<16x1xf32>
        %33 = arith.subf %31, %32 : vector<16x1xf32>
        %cst_25 = arith.constant 0.000000e+00 : f32
        %34 = vector.broadcast %cst_25 : f32 to vector<16x1xf32>
        %35 = arith.maximumf %33, %34 : vector<16x1xf32>
        %c0_26 = arith.constant 0 : index
        %c0_27 = arith.constant 0 : index
        %36 = vector.load %arg4[%c0_26, %c0_27] : memref<16x1xf32, #tpu.memory_space<vmem>>, vector<16x1xf32>
        %cst_28 = arith.constant 9.99999974E-6 : f32
        %37 = vector.broadcast %cst_28 : f32 to vector<16x1xf32>
        %38 = arith.addf %35, %37 : vector<16x1xf32>
        %39 = math.rsqrt %38 : vector<16x1xf32>
        %40 = arith.mulf %36, %39 : vector<16x1xf32>
        %c0_29 = arith.constant 0 : index
        %c0_30 = arith.constant 0 : index
        %41 = vector.load %arg9[%c0_29, %c0_30] : memref<16x1xf32, #tpu.memory_space<vmem>>, vector<16x1xf32>
        tpu.vector_store %arg9[%c0_29, %c0_30], %40 {strides = array<i32>} : memref<16x1xf32, #tpu.memory_space<vmem>>, vector<16x1xf32>,
        %c0_31 = arith.constant 0 : index
        %c0_32 = arith.constant 0 : index
        %42 = vector.load %arg5[%c0_31, %c0_32] : memref<16x1xf32, #tpu.memory_space<vmem>>, vector<16x1xf32>
        %43 = arith.mulf %40, %28 : vector<16x1xf32>
        %44 = arith.subf %42, %43 : vector<16x1xf32>
        %c0_33 = arith.constant 0 : index
        %c0_34 = arith.constant 0 : index
        %45 = vector.load %arg10[%c0_33, %c0_34] : memref<16x1xf32, #tpu.memory_space<vmem>>, vector<16x1xf32>
        tpu.vector_store %arg10[%c0_33, %c0_34], %44 {strides = array<i32>} : memref<16x1xf32, #tpu.memory_space<vmem>>, vector<16x1xf32>,
      } else {
      }
    } else {
    }
    %c1_i32 = arith.constant 1 : i32
    %6 = arith.cmpi eq, %arg0, %c1_i32 : i32
    %7 = arith.extui %6 : i1 to i32
    %c0_i32_4 = arith.constant 0 : i32
    %8 = arith.cmpi ne, %7, %c0_i32_4 : i32
    scf.if %8 {
      %c0_5 = arith.constant 0 : index
      %c0_6 = arith.constant 0 : index
      %9 = vector.load %arg9[%c0_5, %c0_6] : memref<16x1xf32, #tpu.memory_space<vmem>>, vector<16x1xf32>
      %10 = vector.broadcast %9 : vector<16x1xf32> to vector<16x128xf32>
      %11 = arith.mulf %2, %10 : vector<16x128xf32>
      %c0_7 = arith.constant 0 : index
      %c0_8 = arith.constant 0 : index
      %12 = vector.load %arg10[%c0_7, %c0_8] : memref<16x1xf32, #tpu.memory_space<vmem>>, vector<16x1xf32>
      %13 = vector.broadcast %12 : vector<16x1xf32> to vector<16x128xf32>
      %14 = arith.addf %11, %13 : vector<16x128xf32>
      %cst_9 = arith.constant 0.000000e+00 : f32
      %15 = vector.broadcast %cst_9 : f32 to vector<16x128xf32>
      %16 = arith.maximumf %14, %15 : vector<16x128xf32>
      %c0_10 = arith.constant 0 : index
      %c0_11 = arith.constant 0 : index
      %17 = vector.load %arg6[%c0_10, %c0_11] : memref<16x128xf32, #tpu.memory_space<vmem>>, vector<16x128xf32>
      tpu.vector_store %arg6[%c0_10, %c0_11], %16 {strides = array<i32>} : memref<16x128xf32, #tpu.memory_space<vmem>>, vector<16x128xf32>,
    } else {
    }
    return
  }
  func.func @transform_0(%arg0: i32, %arg1: i32) -> (i32, i32) {
    %c0_i32 = arith.constant 0 : i32
    %c0_i32_0 = arith.constant 0 : i32
    %c0_i32_1 = arith.constant 0 : i32
    return %c0_i32, %c0_i32_0 : i32, i32
  }
  func.func @transform_1(%arg0: i32, %arg1: i32) -> (i32, i32) {
    %c0_i32 = arith.constant 0 : i32
    %c0_i32_0 = arith.constant 0 : i32
    return %c0_i32, %arg1 : i32, i32
  }
  func.func @transform_2(%arg0: i32, %arg1: i32) -> (i32, i32) {
    %c0_i32 = arith.constant 0 : i32
    %c0_i32_0 = arith.constant 0 : i32
    %c0_i32_1 = arith.constant 0 : i32
    return %c0_i32, %c0_i32_0 : i32, i32
  }
  func.func @transform_3(%arg0: i32, %arg1: i32) -> (i32, i32) {
    %c0_i32 = arith.constant 0 : i32
    %c0_i32_0 = arith.constant 0 : i32
    %c0_i32_1 = arith.constant 0 : i32
    return %c0_i32, %c0_i32_0 : i32, i32
  }
  func.func @transform_4(%arg0: i32, %arg1: i32) -> (i32, i32) {
    %0 = arith.muli %arg1, %arg0 : i32
    %c0_i32 = arith.constant 0 : i32
    %c0_i32_0 = arith.constant 0 : i32
    return %c0_i32, %0 : i32, i32
  }
}

module attributes {stable_mosaic.version = 11 : i64} {
  func.func @_conv_bn_relu_kernel(%arg0: i32, %arg1: i32, %arg2: memref<32x144xbf16, #tpu.memory_space<vmem>>, %arg3: memref<144x32xbf16, #tpu.memory_space<vmem>>, %arg4: memref<32x1xf32, #tpu.memory_space<vmem>>, %arg5: memref<32x1xf32, #tpu.memory_space<vmem>>, %arg6: memref<32x32xf32, #tpu.memory_space<vmem>>, %arg7: memref<32x1xf32, #tpu.memory_space<vmem>>, %arg8: memref<32x1xf32, #tpu.memory_space<vmem>>, %arg9: memref<32x1xf32, #tpu.memory_space<vmem>>, %arg10: memref<32x1xf32, #tpu.memory_space<vmem>>) attributes {dimension_semantics = [#tpu.dimension_semantics<arbitrary>, #tpu.dimension_semantics<arbitrary>], iteration_bounds = array<i64: 2, 1>, scalar_prefetch = 0 : i64, scratch_operands = 4 : i64, tpu.core_type = #tpu.core_type<tc>, window_params = [{pipeline_mode = #tpu.pipeline_mode<synchronous>, transform_indices = @transform_0, window_bounds = array<i64: 32, 144>}, {transform_indices = @transform_1, window_bounds = array<i64: 144, 32>}, {pipeline_mode = #tpu.pipeline_mode<synchronous>, transform_indices = @transform_2, window_bounds = array<i64: 32, 1>}, {pipeline_mode = #tpu.pipeline_mode<synchronous>, transform_indices = @transform_3, window_bounds = array<i64: 32, 1>}, {transform_indices = @transform_4, window_bounds = array<i64: 32, 32>}]} {
    %c0 = arith.constant 0 : index
    %c0_0 = arith.constant 0 : index
    %0 = vector.load %arg2[%c0, %c0_0] : memref<32x144xbf16, #tpu.memory_space<vmem>>, vector<32x144xbf16>
    %c0_1 = arith.constant 0 : index
    %c0_2 = arith.constant 0 : index
    %1 = vector.load %arg3[%c0_1, %c0_2] : memref<144x32xbf16, #tpu.memory_space<vmem>>, vector<144x32xbf16>
    %cst = arith.constant dense<0.000000e+00> : vector<32x32xf32>
    %2 = tpu.matmul %0, %1, %cst {dimension_numbers = #tpu.dot_dimension_numbers<[1], [0], [0], [1], [0, 0, 1, 1], [], []>} : vector<32x144xbf16>, vector<144x32xbf16>, vector<32x32xf32> -> vector<32x32xf32>
    %c0_i32 = arith.constant 0 : i32
    %3 = arith.cmpi eq, %arg0, %c0_i32 : i32
    %4 = arith.extui %3 : i1 to i32
    %c0_i32_3 = arith.constant 0 : i32
    %5 = arith.cmpi ne, %4, %c0_i32_3 : i32
    scf.if %5 {
      %c0_i32_5 = arith.constant 0 : i32
      %9 = arith.cmpi eq, %arg1, %c0_i32_5 : i32
      %10 = arith.extui %9 : i1 to i32
      %c0_i32_6 = arith.constant 0 : i32
      %11 = arith.cmpi ne, %10, %c0_i32_6 : i32
      scf.if %11 {
        %cst_19 = arith.constant 0.000000e+00 : f32
        %26 = vector.broadcast %cst_19 : f32 to vector<32x1xf32>
        %c0_20 = arith.constant 0 : index
        %c0_21 = arith.constant 0 : index
        %27 = vector.load %arg7[%c0_20, %c0_21] : memref<32x1xf32, #tpu.memory_space<vmem>>, vector<32x1xf32>
        tpu.vector_store %arg7[%c0_20, %c0_21], %26 {strides = array<i32>} : memref<32x1xf32, #tpu.memory_space<vmem>>, vector<32x1xf32>,
        %cst_22 = arith.constant 0.000000e+00 : f32
        %28 = vector.broadcast %cst_22 : f32 to vector<32x1xf32>
        %c0_23 = arith.constant 0 : index
        %c0_24 = arith.constant 0 : index
        %29 = vector.load %arg8[%c0_23, %c0_24] : memref<32x1xf32, #tpu.memory_space<vmem>>, vector<32x1xf32>
        tpu.vector_store %arg8[%c0_23, %c0_24], %28 {strides = array<i32>} : memref<32x1xf32, #tpu.memory_space<vmem>>, vector<32x1xf32>,
      } else {
      }
      %c0_7 = arith.constant 0 : index
      %c0_8 = arith.constant 0 : index
      %12 = vector.load %arg7[%c0_7, %c0_8] : memref<32x1xf32, #tpu.memory_space<vmem>>, vector<32x1xf32>
      %cst_9 = arith.constant dense<0.000000e+00> : vector<32xf32>
      %13 = vector.multi_reduction <add>, %2, %cst_9 [1] : vector<32x32xf32> to vector<32xf32>
      %14 = vector.shape_cast %13 : vector<32xf32> to vector<32x1xf32>
      %15 = arith.addf %12, %14 : vector<32x1xf32>
      %c0_10 = arith.constant 0 : index
      %c0_11 = arith.constant 0 : index
      %16 = vector.load %arg7[%c0_10, %c0_11] : memref<32x1xf32, #tpu.memory_space<vmem>>, vector<32x1xf32>
      tpu.vector_store %arg7[%c0_10, %c0_11], %15 {strides = array<i32>} : memref<32x1xf32, #tpu.memory_space<vmem>>, vector<32x1xf32>,
      %c0_12 = arith.constant 0 : index
      %c0_13 = arith.constant 0 : index
      %17 = vector.load %arg8[%c0_12, %c0_13] : memref<32x1xf32, #tpu.memory_space<vmem>>, vector<32x1xf32>
      %18 = arith.mulf %2, %2 : vector<32x32xf32>
      %cst_14 = arith.constant dense<0.000000e+00> : vector<32xf32>
      %19 = vector.multi_reduction <add>, %18, %cst_14 [1] : vector<32x32xf32> to vector<32xf32>
      %20 = vector.shape_cast %19 : vector<32xf32> to vector<32x1xf32>
      %21 = arith.addf %17, %20 : vector<32x1xf32>
      %c0_15 = arith.constant 0 : index
      %c0_16 = arith.constant 0 : index
      %22 = vector.load %arg8[%c0_15, %c0_16] : memref<32x1xf32, #tpu.memory_space<vmem>>, vector<32x1xf32>
      tpu.vector_store %arg8[%c0_15, %c0_16], %21 {strides = array<i32>} : memref<32x1xf32, #tpu.memory_space<vmem>>, vector<32x1xf32>,
      %c0_i32_17 = arith.constant 0 : i32
      %23 = arith.cmpi eq, %arg1, %c0_i32_17 : i32
      %24 = arith.extui %23 : i1 to i32
      %c0_i32_18 = arith.constant 0 : i32
      %25 = arith.cmpi ne, %24, %c0_i32_18 : i32
      scf.if %25 {
        %c0_19 = arith.constant 0 : index
        %c0_20 = arith.constant 0 : index
        %26 = vector.load %arg7[%c0_19, %c0_20] : memref<32x1xf32, #tpu.memory_space<vmem>>, vector<32x1xf32>
        %cst_21 = arith.constant 3.125000e-02 : f32
        %27 = vector.broadcast %cst_21 : f32 to vector<32x1xf32>
        %28 = arith.mulf %26, %27 : vector<32x1xf32>
        %c0_22 = arith.constant 0 : index
        %c0_23 = arith.constant 0 : index
        %29 = vector.load %arg8[%c0_22, %c0_23] : memref<32x1xf32, #tpu.memory_space<vmem>>, vector<32x1xf32>
        %cst_24 = arith.constant 3.125000e-02 : f32
        %30 = vector.broadcast %cst_24 : f32 to vector<32x1xf32>
        %31 = arith.mulf %29, %30 : vector<32x1xf32>
        %32 = arith.mulf %28, %28 : vector<32x1xf32>
        %33 = arith.subf %31, %32 : vector<32x1xf32>
        %cst_25 = arith.constant 0.000000e+00 : f32
        %34 = vector.broadcast %cst_25 : f32 to vector<32x1xf32>
        %35 = arith.maximumf %33, %34 : vector<32x1xf32>
        %c0_26 = arith.constant 0 : index
        %c0_27 = arith.constant 0 : index
        %36 = vector.load %arg4[%c0_26, %c0_27] : memref<32x1xf32, #tpu.memory_space<vmem>>, vector<32x1xf32>
        %cst_28 = arith.constant 9.99999974E-6 : f32
        %37 = vector.broadcast %cst_28 : f32 to vector<32x1xf32>
        %38 = arith.addf %35, %37 : vector<32x1xf32>
        %39 = math.rsqrt %38 : vector<32x1xf32>
        %40 = arith.mulf %36, %39 : vector<32x1xf32>
        %c0_29 = arith.constant 0 : index
        %c0_30 = arith.constant 0 : index
        %41 = vector.load %arg9[%c0_29, %c0_30] : memref<32x1xf32, #tpu.memory_space<vmem>>, vector<32x1xf32>
        tpu.vector_store %arg9[%c0_29, %c0_30], %40 {strides = array<i32>} : memref<32x1xf32, #tpu.memory_space<vmem>>, vector<32x1xf32>,
        %c0_31 = arith.constant 0 : index
        %c0_32 = arith.constant 0 : index
        %42 = vector.load %arg5[%c0_31, %c0_32] : memref<32x1xf32, #tpu.memory_space<vmem>>, vector<32x1xf32>
        %43 = arith.mulf %40, %28 : vector<32x1xf32>
        %44 = arith.subf %42, %43 : vector<32x1xf32>
        %c0_33 = arith.constant 0 : index
        %c0_34 = arith.constant 0 : index
        %45 = vector.load %arg10[%c0_33, %c0_34] : memref<32x1xf32, #tpu.memory_space<vmem>>, vector<32x1xf32>
        tpu.vector_store %arg10[%c0_33, %c0_34], %44 {strides = array<i32>} : memref<32x1xf32, #tpu.memory_space<vmem>>, vector<32x1xf32>,
      } else {
      }
    } else {
    }
    %c1_i32 = arith.constant 1 : i32
    %6 = arith.cmpi eq, %arg0, %c1_i32 : i32
    %7 = arith.extui %6 : i1 to i32
    %c0_i32_4 = arith.constant 0 : i32
    %8 = arith.cmpi ne, %7, %c0_i32_4 : i32
    scf.if %8 {
      %c0_5 = arith.constant 0 : index
      %c0_6 = arith.constant 0 : index
      %9 = vector.load %arg9[%c0_5, %c0_6] : memref<32x1xf32, #tpu.memory_space<vmem>>, vector<32x1xf32>
      %10 = vector.broadcast %9 : vector<32x1xf32> to vector<32x32xf32>
      %11 = arith.mulf %2, %10 : vector<32x32xf32>
      %c0_7 = arith.constant 0 : index
      %c0_8 = arith.constant 0 : index
      %12 = vector.load %arg10[%c0_7, %c0_8] : memref<32x1xf32, #tpu.memory_space<vmem>>, vector<32x1xf32>
      %13 = vector.broadcast %12 : vector<32x1xf32> to vector<32x32xf32>
      %14 = arith.addf %11, %13 : vector<32x32xf32>
      %cst_9 = arith.constant 0.000000e+00 : f32
      %15 = vector.broadcast %cst_9 : f32 to vector<32x32xf32>
      %16 = arith.maximumf %14, %15 : vector<32x32xf32>
      %c0_10 = arith.constant 0 : index
      %c0_11 = arith.constant 0 : index
      %17 = vector.load %arg6[%c0_10, %c0_11] : memref<32x32xf32, #tpu.memory_space<vmem>>, vector<32x32xf32>
      tpu.vector_store %arg6[%c0_10, %c0_11], %16 {strides = array<i32>} : memref<32x32xf32, #tpu.memory_space<vmem>>, vector<32x32xf32>,
    } else {
    }
    return
  }
  func.func @transform_0(%arg0: i32, %arg1: i32) -> (i32, i32) {
    %c0_i32 = arith.constant 0 : i32
    %c0_i32_0 = arith.constant 0 : i32
    %c0_i32_1 = arith.constant 0 : i32
    return %c0_i32, %c0_i32_0 : i32, i32
  }
  func.func @transform_1(%arg0: i32, %arg1: i32) -> (i32, i32) {
    %c0_i32 = arith.constant 0 : i32
    %c0_i32_0 = arith.constant 0 : i32
    return %c0_i32, %arg1 : i32, i32
  }
  func.func @transform_2(%arg0: i32, %arg1: i32) -> (i32, i32) {
    %c0_i32 = arith.constant 0 : i32
    %c0_i32_0 = arith.constant 0 : i32
    %c0_i32_1 = arith.constant 0 : i32
    return %c0_i32, %c0_i32_0 : i32, i32
  }
  func.func @transform_3(%arg0: i32, %arg1: i32) -> (i32, i32) {
    %c0_i32 = arith.constant 0 : i32
    %c0_i32_0 = arith.constant 0 : i32
    %c0_i32_1 = arith.constant 0 : i32
    return %c0_i32, %c0_i32_0 : i32, i32
  }
  func.func @transform_4(%arg0: i32, %arg1: i32) -> (i32, i32) {
    %0 = arith.muli %arg1, %arg0 : i32
    %c0_i32 = arith.constant 0 : i32
    %c0_i32_0 = arith.constant 0 : i32
    return %c0_i32, %0 : i32, i32
  }
}

module attributes {stable_mosaic.version = 11 : i64} {
  func.func @_conv_bn_relu_kernel(%arg0: i32, %arg1: i32, %arg2: memref<64x288xbf16, #tpu.memory_space<vmem>>, %arg3: memref<288x8xbf16, #tpu.memory_space<vmem>>, %arg4: memref<64x1xf32, #tpu.memory_space<vmem>>, %arg5: memref<64x1xf32, #tpu.memory_space<vmem>>, %arg6: memref<64x8xf32, #tpu.memory_space<vmem>>, %arg7: memref<64x1xf32, #tpu.memory_space<vmem>>, %arg8: memref<64x1xf32, #tpu.memory_space<vmem>>, %arg9: memref<64x1xf32, #tpu.memory_space<vmem>>, %arg10: memref<64x1xf32, #tpu.memory_space<vmem>>) attributes {dimension_semantics = [#tpu.dimension_semantics<arbitrary>, #tpu.dimension_semantics<arbitrary>], iteration_bounds = array<i64: 2, 1>, scalar_prefetch = 0 : i64, scratch_operands = 4 : i64, tpu.core_type = #tpu.core_type<tc>, window_params = [{pipeline_mode = #tpu.pipeline_mode<synchronous>, transform_indices = @transform_0, window_bounds = array<i64: 64, 288>}, {transform_indices = @transform_1, window_bounds = array<i64: 288, 8>}, {pipeline_mode = #tpu.pipeline_mode<synchronous>, transform_indices = @transform_2, window_bounds = array<i64: 64, 1>}, {pipeline_mode = #tpu.pipeline_mode<synchronous>, transform_indices = @transform_3, window_bounds = array<i64: 64, 1>}, {transform_indices = @transform_4, window_bounds = array<i64: 64, 8>}]} {
    %c0 = arith.constant 0 : index
    %c0_0 = arith.constant 0 : index
    %0 = vector.load %arg2[%c0, %c0_0] : memref<64x288xbf16, #tpu.memory_space<vmem>>, vector<64x288xbf16>
    %c0_1 = arith.constant 0 : index
    %c0_2 = arith.constant 0 : index
    %1 = vector.load %arg3[%c0_1, %c0_2] : memref<288x8xbf16, #tpu.memory_space<vmem>>, vector<288x8xbf16>
    %cst = arith.constant dense<0.000000e+00> : vector<64x8xf32>
    %2 = tpu.matmul %0, %1, %cst {dimension_numbers = #tpu.dot_dimension_numbers<[1], [0], [0], [1], [0, 0, 1, 1], [], []>} : vector<64x288xbf16>, vector<288x8xbf16>, vector<64x8xf32> -> vector<64x8xf32>
    %c0_i32 = arith.constant 0 : i32
    %3 = arith.cmpi eq, %arg0, %c0_i32 : i32
    %4 = arith.extui %3 : i1 to i32
    %c0_i32_3 = arith.constant 0 : i32
    %5 = arith.cmpi ne, %4, %c0_i32_3 : i32
    scf.if %5 {
      %c0_i32_5 = arith.constant 0 : i32
      %9 = arith.cmpi eq, %arg1, %c0_i32_5 : i32
      %10 = arith.extui %9 : i1 to i32
      %c0_i32_6 = arith.constant 0 : i32
      %11 = arith.cmpi ne, %10, %c0_i32_6 : i32
      scf.if %11 {
        %cst_19 = arith.constant 0.000000e+00 : f32
        %26 = vector.broadcast %cst_19 : f32 to vector<64x1xf32>
        %c0_20 = arith.constant 0 : index
        %c0_21 = arith.constant 0 : index
        %27 = vector.load %arg7[%c0_20, %c0_21] : memref<64x1xf32, #tpu.memory_space<vmem>>, vector<64x1xf32>
        tpu.vector_store %arg7[%c0_20, %c0_21], %26 {strides = array<i32>} : memref<64x1xf32, #tpu.memory_space<vmem>>, vector<64x1xf32>,
        %cst_22 = arith.constant 0.000000e+00 : f32
        %28 = vector.broadcast %cst_22 : f32 to vector<64x1xf32>
        %c0_23 = arith.constant 0 : index
        %c0_24 = arith.constant 0 : index
        %29 = vector.load %arg8[%c0_23, %c0_24] : memref<64x1xf32, #tpu.memory_space<vmem>>, vector<64x1xf32>
        tpu.vector_store %arg8[%c0_23, %c0_24], %28 {strides = array<i32>} : memref<64x1xf32, #tpu.memory_space<vmem>>, vector<64x1xf32>,
      } else {
      }
      %c0_7 = arith.constant 0 : index
      %c0_8 = arith.constant 0 : index
      %12 = vector.load %arg7[%c0_7, %c0_8] : memref<64x1xf32, #tpu.memory_space<vmem>>, vector<64x1xf32>
      %cst_9 = arith.constant dense<0.000000e+00> : vector<64xf32>
      %13 = vector.multi_reduction <add>, %2, %cst_9 [1] : vector<64x8xf32> to vector<64xf32>
      %14 = vector.shape_cast %13 : vector<64xf32> to vector<64x1xf32>
      %15 = arith.addf %12, %14 : vector<64x1xf32>
      %c0_10 = arith.constant 0 : index
      %c0_11 = arith.constant 0 : index
      %16 = vector.load %arg7[%c0_10, %c0_11] : memref<64x1xf32, #tpu.memory_space<vmem>>, vector<64x1xf32>
      tpu.vector_store %arg7[%c0_10, %c0_11], %15 {strides = array<i32>} : memref<64x1xf32, #tpu.memory_space<vmem>>, vector<64x1xf32>,
      %c0_12 = arith.constant 0 : index
      %c0_13 = arith.constant 0 : index
      %17 = vector.load %arg8[%c0_12, %c0_13] : memref<64x1xf32, #tpu.memory_space<vmem>>, vector<64x1xf32>
      %18 = arith.mulf %2, %2 : vector<64x8xf32>
      %cst_14 = arith.constant dense<0.000000e+00> : vector<64xf32>
      %19 = vector.multi_reduction <add>, %18, %cst_14 [1] : vector<64x8xf32> to vector<64xf32>
      %20 = vector.shape_cast %19 : vector<64xf32> to vector<64x1xf32>
      %21 = arith.addf %17, %20 : vector<64x1xf32>
      %c0_15 = arith.constant 0 : index
      %c0_16 = arith.constant 0 : index
      %22 = vector.load %arg8[%c0_15, %c0_16] : memref<64x1xf32, #tpu.memory_space<vmem>>, vector<64x1xf32>
      tpu.vector_store %arg8[%c0_15, %c0_16], %21 {strides = array<i32>} : memref<64x1xf32, #tpu.memory_space<vmem>>, vector<64x1xf32>,
      %c0_i32_17 = arith.constant 0 : i32
      %23 = arith.cmpi eq, %arg1, %c0_i32_17 : i32
      %24 = arith.extui %23 : i1 to i32
      %c0_i32_18 = arith.constant 0 : i32
      %25 = arith.cmpi ne, %24, %c0_i32_18 : i32
      scf.if %25 {
        %c0_19 = arith.constant 0 : index
        %c0_20 = arith.constant 0 : index
        %26 = vector.load %arg7[%c0_19, %c0_20] : memref<64x1xf32, #tpu.memory_space<vmem>>, vector<64x1xf32>
        %cst_21 = arith.constant 1.250000e-01 : f32
        %27 = vector.broadcast %cst_21 : f32 to vector<64x1xf32>
        %28 = arith.mulf %26, %27 : vector<64x1xf32>
        %c0_22 = arith.constant 0 : index
        %c0_23 = arith.constant 0 : index
        %29 = vector.load %arg8[%c0_22, %c0_23] : memref<64x1xf32, #tpu.memory_space<vmem>>, vector<64x1xf32>
        %cst_24 = arith.constant 1.250000e-01 : f32
        %30 = vector.broadcast %cst_24 : f32 to vector<64x1xf32>
        %31 = arith.mulf %29, %30 : vector<64x1xf32>
        %32 = arith.mulf %28, %28 : vector<64x1xf32>
        %33 = arith.subf %31, %32 : vector<64x1xf32>
        %cst_25 = arith.constant 0.000000e+00 : f32
        %34 = vector.broadcast %cst_25 : f32 to vector<64x1xf32>
        %35 = arith.maximumf %33, %34 : vector<64x1xf32>
        %c0_26 = arith.constant 0 : index
        %c0_27 = arith.constant 0 : index
        %36 = vector.load %arg4[%c0_26, %c0_27] : memref<64x1xf32, #tpu.memory_space<vmem>>, vector<64x1xf32>
        %cst_28 = arith.constant 9.99999974E-6 : f32
        %37 = vector.broadcast %cst_28 : f32 to vector<64x1xf32>
        %38 = arith.addf %35, %37 : vector<64x1xf32>
        %39 = math.rsqrt %38 : vector<64x1xf32>
        %40 = arith.mulf %36, %39 : vector<64x1xf32>
        %c0_29 = arith.constant 0 : index
        %c0_30 = arith.constant 0 : index
        %41 = vector.load %arg9[%c0_29, %c0_30] : memref<64x1xf32, #tpu.memory_space<vmem>>, vector<64x1xf32>
        tpu.vector_store %arg9[%c0_29, %c0_30], %40 {strides = array<i32>} : memref<64x1xf32, #tpu.memory_space<vmem>>, vector<64x1xf32>,
        %c0_31 = arith.constant 0 : index
        %c0_32 = arith.constant 0 : index
        %42 = vector.load %arg5[%c0_31, %c0_32] : memref<64x1xf32, #tpu.memory_space<vmem>>, vector<64x1xf32>
        %43 = arith.mulf %40, %28 : vector<64x1xf32>
        %44 = arith.subf %42, %43 : vector<64x1xf32>
        %c0_33 = arith.constant 0 : index
        %c0_34 = arith.constant 0 : index
        %45 = vector.load %arg10[%c0_33, %c0_34] : memref<64x1xf32, #tpu.memory_space<vmem>>, vector<64x1xf32>
        tpu.vector_store %arg10[%c0_33, %c0_34], %44 {strides = array<i32>} : memref<64x1xf32, #tpu.memory_space<vmem>>, vector<64x1xf32>,
      } else {
      }
    } else {
    }
    %c1_i32 = arith.constant 1 : i32
    %6 = arith.cmpi eq, %arg0, %c1_i32 : i32
    %7 = arith.extui %6 : i1 to i32
    %c0_i32_4 = arith.constant 0 : i32
    %8 = arith.cmpi ne, %7, %c0_i32_4 : i32
    scf.if %8 {
      %c0_5 = arith.constant 0 : index
      %c0_6 = arith.constant 0 : index
      %9 = vector.load %arg9[%c0_5, %c0_6] : memref<64x1xf32, #tpu.memory_space<vmem>>, vector<64x1xf32>
      %10 = vector.broadcast %9 : vector<64x1xf32> to vector<64x8xf32>
      %11 = arith.mulf %2, %10 : vector<64x8xf32>
      %c0_7 = arith.constant 0 : index
      %c0_8 = arith.constant 0 : index
      %12 = vector.load %arg10[%c0_7, %c0_8] : memref<64x1xf32, #tpu.memory_space<vmem>>, vector<64x1xf32>
      %13 = vector.broadcast %12 : vector<64x1xf32> to vector<64x8xf32>
      %14 = arith.addf %11, %13 : vector<64x8xf32>
      %cst_9 = arith.constant 0.000000e+00 : f32
      %15 = vector.broadcast %cst_9 : f32 to vector<64x8xf32>
      %16 = arith.maximumf %14, %15 : vector<64x8xf32>
      %c0_10 = arith.constant 0 : index
      %c0_11 = arith.constant 0 : index
      %17 = vector.load %arg6[%c0_10, %c0_11] : memref<64x8xf32, #tpu.memory_space<vmem>>, vector<64x8xf32>
      tpu.vector_store %arg6[%c0_10, %c0_11], %16 {strides = array<i32>} : memref<64x8xf32, #tpu.memory_space<vmem>>, vector<64x8xf32>,
    } else {
    }
    return
  }
  func.func @transform_0(%arg0: i32, %arg1: i32) -> (i32, i32) {
    %c0_i32 = arith.constant 0 : i32
    %c0_i32_0 = arith.constant 0 : i32
    %c0_i32_1 = arith.constant 0 : i32
    return %c0_i32, %c0_i32_0 : i32, i32
  }
  func.func @transform_1(%arg0: i32, %arg1: i32) -> (i32, i32) {
    %c0_i32 = arith.constant 0 : i32
    %c0_i32_0 = arith.constant 0 : i32
    return %c0_i32, %arg1 : i32, i32
  }
  func.func @transform_2(%arg0: i32, %arg1: i32) -> (i32, i32) {
    %c0_i32 = arith.constant 0 : i32
    %c0_i32_0 = arith.constant 0 : i32
    %c0_i32_1 = arith.constant 0 : i32
    return %c0_i32, %c0_i32_0 : i32, i32
  }
  func.func @transform_3(%arg0: i32, %arg1: i32) -> (i32, i32) {
    %c0_i32 = arith.constant 0 : i32
    %c0_i32_0 = arith.constant 0 : i32
    %c0_i32_1 = arith.constant 0 : i32
    return %c0_i32, %c0_i32_0 : i32, i32
  }
  func.func @transform_4(%arg0: i32, %arg1: i32) -> (i32, i32) {
    %0 = arith.muli %arg1, %arg0 : i32
    %c0_i32 = arith.constant 0 : i32
    %c0_i32_0 = arith.constant 0 : i32
    return %c0_i32, %0 : i32, i32
  }
}

</mosaic_0001>

<llo_original>
// kernel: spec_encoder_forward.4
$region0: #{spec_encoder_forward.4}
  #allocation0 [shape = 'u32[]', space=smem, size = 0x4, offset = 0x4, fixed_abs, tag = 'smem constant byte address 0x4 - core index']
  #allocation1 [shape = 'u32[144,128]{1,0:T(1,128)}', space=vmem, size = 0x12000, scoped, tag = 'internal scratch']
  #allocation2 [shape = 'f32[32,1]{1,0:T(8,128)}', space=vmem, size = 0x4000, scoped, tag = 'scratch operand']
  #allocation3 [shape = 'f32[32,1]{1,0:T(8,128)}', space=vmem, size = 0x4000, scoped, tag = 'scratch operand']
  #allocation4 [shape = 'f32[32,1]{1,0:T(8,128)}', space=vmem, size = 0x4000, scoped, tag = 'scratch operand']
  #allocation5 [shape = 'f32[32,1]{1,0:T(8,128)}', space=vmem, size = 0x4000, scoped, tag = 'scratch operand']
  %s0 = inlined_call_operand.vmem [shape: bf16[32,144], index: 0, kind: input, shape index: {}]
  %s1 = inlined_call_operand.vmem [shape: bf16[144,32], index: 1, kind: input, shape index: {}]
  %s2 = inlined_call_operand.vmem [shape: f32[32,1], index: 2, kind: input, shape index: {}]
  %s3 = inlined_call_operand.vmem [shape: f32[32,1], index: 3, kind: input, shape index: {}]
  %s4 = inlined_call_operand.vmem [shape: f32[32,32], index: 4, kind: output, shape index: {}]
  %s5 = sld [smem:[#allocation0]]
  $region65: #{spec_encoder_forward.4} parent=0
    _
  %s7 = ssub.s32 1, %s5
  %s8 = scalar_select 0, %s7, %s5
  loop: start=0, step=1, limit=4
  $region2: #{spec_encoder_forward.4} parent=0 // loop_pre_header
    _
  $region3: #{spec_encoder_forward.4} parent=0 // loop_header
    %s10 = sphi 0, %s14
    %p11 = scmp.ge.s32.totalorder %s10, 4
    %s17 = sphi 0, %s29
    %s18 = sphi 0, %s25
    %s19 = sphi 0, %s17
    %s20 = sphi 0, %s18
    %s21 = sphi 0, %s19
    %s22 = sphi 0, %s20
    %s30 = sphi 0, %s30
    %s32 = sphi 0, %s30
    %s33 = sphi 0, %s32
    %s47 = sphi 0, %s33
    %s53 = sphi 0, %s55
    %s56 = sphi 0, %s53
    %s57 = sphi 0, %s56
    %s73 = sphi 0, %s57
    %s77 = sphi 0, %s77
    %s79 = sphi 0, %s77
    %s80 = sphi 0, %s79
    %s94 = sphi 0, %s80
    %s98 = sphi 0, %s98
    %s100 = sphi 0, %s98
    %s101 = sphi 0, %s100
    %s115 = sphi 0, %s101
    %s123 = sphi 0, %s125
    %s126 = sphi 0, %s123
    %s127 = sphi 0, %s126
    %s143 = sphi 0, %s127
  $region4: #{spec_encoder_forward.4} parent=0 // loop_header_branch
    %13 = sbr.rel (%p11) target = $region8
  $region5: #{spec_encoder_forward.4} parent=0 // loop_body
    %s15 = ssub.s32 %s10, 1
    %s16 = ssub.s32 %s10, 2
    %s23 = sadd.s32 1, %s18
    %p24 = scmp.ge.s32.totalorder %s23, 1
    %s25 = scalar_select %p24, 0, %s23
    %s26 = sadd.s32 1, %s17
    %s27 = scalar_select %p24, %s26, %s17
    %p28 = scmp.ge.s32.totalorder %s27, 2
    %s29 = scalar_select %p28, 0, %s27
    %s31 = sadd.s32 %s30, 1
    %p34 = scmp.eq.s32.totalorder %s10, 1
    %p35 = scmp.ne.s32.totalorder %s30, %s32
    %p36 = scmp.eq.s32.totalorder %s10, 0
    %p37 = por %p35, %p36
    %p38 = scmp.ne.s32.totalorder %s30, %s32
    %p39 = scmp.eq.s32.totalorder %s15, 1
    %p40 = por %p38, %p39
    %p41 = scmp.ne.s32.totalorder %s32, %s33
    %p42 = scmp.eq.s32.totalorder %s15, 0
    %p43 = por %p41, %p42
    %p44 = scmp.ne.s32.totalorder %s32, %s33
    %p45 = scmp.eq.s32.totalorder %s16, 1
    %p46 = por %p44, %p45
    %p48 = scmp.ne.s32.totalorder %s33, %s47
    %p49 = scmp.eq.s32.totalorder %s16, 0
    %p50 = por %p48, %p49
    %s51 = ssub.s32 %s18, %s25
    %p52 = scmp.eq.s32.totalorder %s51, 0
    %s54 = sadd.s32 %s53, 1
    %s55 = scalar_select %p52, %s53, %s54
    %p58 = pneg %p52
    %p59 = scmp.eq.s32.totalorder %s10, 1
    %p60 = por %p58, %p59
    %p61 = scmp.ne.s32.totalorder %s53, %s56
    %p62 = scmp.eq.s32.totalorder %s10, 0
    %p63 = por %p61, %p62
    %p64 = scmp.ne.s32.totalorder %s53, %s56
    %p65 = scmp.eq.s32.totalorder %s15, 1
    %p66 = por %p64, %p65
    %p67 = scmp.ne.s32.totalorder %s56, %s57
    %p68 = scmp.eq.s32.totalorder %s15, 0
    %p69 = por %p67, %p68
    %p70 = scmp.ne.s32.totalorder %s56, %s57
    %p71 = scmp.eq.s32.totalorder %s16, 1
    %p72 = por %p70, %p71
    %p74 = scmp.ne.s32.totalorder %s57, %s73
    %p75 = scmp.eq.s32.totalorder %s16, 0
    %p76 = por %p74, %p75
    %s78 = sadd.s32 %s77, 1
    %p81 = scmp.eq.s32.totalorder %s10, 1
    %p82 = scmp.ne.s32.totalorder %s77, %s79
    %p83 = scmp.eq.s32.totalorder %s10, 0
    %p84 = por %p82, %p83
    %p85 = scmp.ne.s32.totalorder %s77, %s79
    %p86 = scmp.eq.s32.totalorder %s15, 1
    %p87 = por %p85, %p86
    %p88 = scmp.ne.s32.totalorder %s79, %s80
    %p89 = scmp.eq.s32.totalorder %s15, 0
    %p90 = por %p88, %p89
    %p91 = scmp.ne.s32.totalorder %s79, %s80
    %p92 = scmp.eq.s32.totalorder %s16, 1
    %p93 = por %p91, %p92
    %p95 = scmp.ne.s32.totalorder %s80, %s94
    %p96 = scmp.eq.s32.totalorder %s16, 0
    %p97 = por %p95, %p96
    %s99 = sadd.s32 %s98, 1
    %p102 = scmp.eq.s32.totalorder %s10, 1
    %p103 = scmp.ne.s32.totalorder %s98, %s100
    %p104 = scmp.eq.s32.totalorder %s10, 0
    %p105 = por %p103, %p104
    %p106 = scmp.ne.s32.totalorder %s98, %s100
    %p107 = scmp.eq.s32.totalorder %s15, 1
    %p108 = por %p106, %p107
    %p109 = scmp.ne.s32.totalorder %s100, %s101
    %p110 = scmp.eq.s32.totalorder %s15, 0
    %p111 = por %p109, %p110
    %p112 = scmp.ne.s32.totalorder %s100, %s101
    %p113 = scmp.eq.s32.totalorder %s16, 1
    %p114 = por %p112, %p113
    %p116 = scmp.ne.s32.totalorder %s101, %s115
    %p117 = scmp.eq.s32.totalorder %s16, 0
    %p118 = por %p116, %p117
    %s119 = smul.u32 %s18, %s17
    %s120 = smul.u32 %s25, %s29
    %s121 = ssub.s32 %s119, %s120
    %p122 = scmp.eq.s32.totalorder %s121, 0
    %s124 = sadd.s32 %s123, 1
    %s125 = scalar_select %p122, %s123, %s124
    %p128 = pneg %p122
    %p129 = scmp.eq.s32.totalorder %s10, 1
    %p130 = por %p128, %p129
    %p131 = scmp.ne.s32.totalorder %s123, %s126
    %p132 = scmp.eq.s32.totalorder %s10, 0
    %p133 = por %p131, %p132
    %p134 = scmp.ne.s32.totalorder %s123, %s126
    %p135 = scmp.eq.s32.totalorder %s15, 1
    %p136 = por %p134, %p135
    %p137 = scmp.ne.s32.totalorder %s126, %s127
    %p138 = scmp.eq.s32.totalorder %s15, 0
    %p139 = por %p137, %p138
    %p140 = scmp.ne.s32.totalorder %s126, %s127
    %p141 = scmp.eq.s32.totalorder %s16, 1
    %p142 = por %p140, %p141
    %p144 = scmp.ne.s32.totalorder %s127, %s143
    %p145 = scmp.eq.s32.totalorder %s16, 0
    %p146 = por %p144, %p145
    %p147 = scmp.le.s32.totalorder 1, %s10
    %p148 = scmp.lt.s32.totalorder %s10, 3
    %p149 = pnand %p147, %p148
    %p150 = pneg %p149
    // Predicated region
    $region9: #{spec_encoder_forward.4} parent=5 // pred_check
      _
    $region10: #{spec_encoder_forward.4} parent=5 // pred_check_branch
      %152 = sbr.rel (%p149) target = $region12
    $region11: #{spec_encoder_forward.4} parent=5 // pred_region
      %s153 = ssub.s32 %s10, 1
      // Predicated region
      $region13: #{spec_encoder_forward.4} parent=11 // pred_check
        %p154 = pneg %p43
      $region14: #{spec_encoder_forward.4} parent=11 // pred_check_branch
        %156 = sbr.rel (%p154) target = $region16
      $region15: #{spec_encoder_forward.4} parent=11 // pred_region
        _
      $region16: #{spec_encoder_forward.4} parent=11 // pred_fallthru
        _
      // Predicated region
      $region17: #{spec_encoder_forward.4} parent=11 // pred_check
        %p157 = pneg %p69
      $region18: #{spec_encoder_forward.4} parent=11 // pred_check_branch
        %159 = sbr.rel (%p157) target = $region20
      $region19: #{spec_encoder_forward.4} parent=11 // pred_region
        %p160 = scmp.lt.s32.totalorder %s20, 0
        %s161 = scalar_select %p160, %s20, 0
        %s162 = smul.addr %s161, 4
        %s163 = scalar_lea.vmem %s1, %s162
      $region20: #{spec_encoder_forward.4} parent=11 // pred_fallthru
        _
      // Predicated region
      $region21: #{spec_encoder_forward.4} parent=11 // pred_check
        %p164 = pneg %p90
      $region22: #{spec_encoder_forward.4} parent=11 // pred_check_branch
        %166 = sbr.rel (%p164) target = $region24
      $region23: #{spec_encoder_forward.4} parent=11 // pred_region
        _
      $region24: #{spec_encoder_forward.4} parent=11 // pred_fallthru
        _
      // Predicated region
      $region25: #{spec_encoder_forward.4} parent=11 // pred_check
        %p167 = pneg %p111
      $region26: #{spec_encoder_forward.4} parent=11 // pred_check_branch
        %169 = sbr.rel (%p167) target = $region28
      $region27: #{spec_encoder_forward.4} parent=11 // pred_region
        _
      $region28: #{spec_encoder_forward.4} parent=11 // pred_fallthru
        _
    $region12: #{spec_encoder_forward.4} parent=5 // pred_fallthru
      _
    %p170 = scmp.lt.s32.totalorder %s10, 2
    // Predicated region
    $region29: #{spec_encoder_forward.4} parent=5 // pred_check
      %p171 = pneg %p170
    $region30: #{spec_encoder_forward.4} parent=5 // pred_check_branch
      %173 = sbr.rel (%p171) target = $region32
    $region31: #{spec_encoder_forward.4} parent=5 // pred_region
      _
    $region32: #{spec_encoder_forward.4} parent=5 // pred_fallthru
      _
    %p174 = scmp.le.s32.totalorder 1, %s10
    %p175 = scmp.lt.s32.totalorder %s10, 3
    %p176 = pnand %p174, %p175
    %p177 = pneg %p176
    // Predicated region
    $region33: #{spec_encoder_forward.4} parent=5 // pred_check
      _
    $region34: #{spec_encoder_forward.4} parent=5 // pred_check_branch
      %179 = sbr.rel (%p176) target = $region36
    $region35: #{spec_encoder_forward.4} parent=5 // pred_region
      %s180 = ssub.s32 %s10, 1
      %p181 = pneg %p43
      %p182 = pneg %p40
      %p183 = scmp.lt.s32.totalorder %s20, 0
      %s184 = scalar_select %p183, %s20, 0
      %s185 = smul.addr %s184, 4
      %s186 = scalar_lea.vmem %s1, %s185
      %p187 = pneg %p69
      %p188 = pneg %p66
      %p189 = pneg %p90
      %p190 = pneg %p87
      %p191 = pneg %p111
      %p192 = pneg %p108
      %p193 = pneg %p139
      %p194 = pneg %p136
      %s195 = smul.u32 %s20, %s19
      %p196 = scmp.lt.s32.totalorder %s195, 0
      %s197 = scalar_select %p196, %s195, 0
      %s198 = smul.addr %s197, 8
      %s199 = scalar_lea.vmem %s4, %s198
      %p200 = scmp.lt.s32.totalorder %s20, 0
      %s201 = scalar_select %p200, %s20, 0
      %s202 = smul.addr %s201, 4
      %s203 = scalar_lea.vmem %s1, %s202
      %s204 = smul.u32 %s20, %s19
      %p205 = scmp.lt.s32.totalorder %s204, 0
      %s206 = scalar_select %p205, %s204, 0
      %s207 = smul.addr %s206, 8
      %s208 = scalar_lea.vmem %s4, %s207
      %s209 = smul.u32 %s20, %s19
      %v211 = vld [vmem:[%s0] sm:$0xff]
      %v212 = vld [vmem:[%s0 + $0x8] sm:$0xff]
      %v213 = vld [vmem:[%s0 + $0x10] sm:$0xff]
      %v214 = vld [vmem:[%s0 + $0x18] sm:$0xff]
      %v215 = vld [vmem:[%s203] sm:$0xf]
      %v216 = vld [vmem:[%s203 + $0x4] sm:$0xf]
      %v217 = vld [vmem:[%s203 + $0x8] sm:$0xf]
      %v218 = vld [vmem:[%s203 + $0xc] sm:$0xf]
      %v219 = vld [vmem:[%s203 + $0x10] sm:$0xf]
      %v220 = vld [vmem:[%s203 + $0x14] sm:$0xf]
      %v221 = vld [vmem:[%s203 + $0x18] sm:$0xf]
      %v222 = vld [vmem:[%s203 + $0x1c] sm:$0xf]
      %v223 = vld [vmem:[%s203 + $0x20] sm:$0xf]
      %v224 = vld [vmem:[%s203 + $0x24] sm:$0xf]
      %v225 = vld [vmem:[%s203 + $0x28] sm:$0xf]
      %v226 = vld [vmem:[%s203 + $0x2c] sm:$0xf]
      %v227 = vld [vmem:[%s203 + $0x30] sm:$0xf]
      %v228 = vld [vmem:[%s203 + $0x34] sm:$0xf]
      %v229 = vld [vmem:[%s203 + $0x38] sm:$0xf]
      %v230 = vld [vmem:[%s203 + $0x3c] sm:$0xf]
      %v231 = vld [vmem:[%s203 + $0x40] sm:$0xf]
      %v232 = vld [vmem:[%s203 + $0x44] sm:$0xf]
      %v237 = vunpack.c.l.b16 %v211
      %v238 = vunpack.c.h.b16 %v211
      %v239 = vunpack.c.l.b16 %v212
      %v240 = vunpack.c.h.b16 %v212
      %v241 = vunpack.c.l.b16 %v213
      %v242 = vunpack.c.h.b16 %v213
      %v243 = vunpack.c.l.b16 %v214
      %v244 = vunpack.c.h.b16 %v214
      %v245 = vpack.c.b16 %v239, %v237
      %v246 = vpack.c.b16 %v240, %v238
      %v247 = vpack.c.b16 %v243, %v241
      %v248 = vpack.c.b16 %v244, %v242
      %v269 = vunpack.c.l.b16 %v215
      %v270 = vunpack.c.l.b16 %v216
      %v271 = vunpack.c.l.b16 %v217
      %v272 = vunpack.c.l.b16 %v218
      %v273 = vunpack.c.l.b16 %v219
      %v274 = vunpack.c.l.b16 %v220
      %v275 = vunpack.c.l.b16 %v221
      %v276 = vunpack.c.l.b16 %v222
      %v277 = vunpack.c.l.b16 %v223
      %v278 = vunpack.c.l.b16 %v224
      %v279 = vunpack.c.l.b16 %v225
      %v280 = vunpack.c.l.b16 %v226
      %v281 = vunpack.c.l.b16 %v227
      %v282 = vunpack.c.l.b16 %v228
      %v283 = vunpack.c.l.b16 %v229
      %v284 = vunpack.c.l.b16 %v230
      %v285 = vunpack.c.l.b16 %v231
      %v286 = vunpack.c.l.b16 %v232
      %v287 = vpack.c.b16 %v270, %v269
      %v288 = vpack.c.b16 %v272, %v271
      %v289 = vpack.c.b16 %v274, %v273
      %v290 = vpack.c.b16 %v276, %v275
      %v291 = vpack.c.b16 %v278, %v277
      %v292 = vpack.c.b16 %v280, %v279
      %v293 = vpack.c.b16 %v282, %v281
      %v294 = vpack.c.b16 %v284, %v283
      %v295 = vpack.c.b16 %v286, %v285
      %vm305 = vcmask 130048
      %v307 = vsel %vm305, %v246, 0
      %v310 = vsel %vm305, %v248, 0
      %312 = vmatprep.subr.bf16.mxu0 0
      %313 = vmatpush1.bf16.msra.mxu0 %v294
      %314 = vmatprep.subr.bf16.mxu0 0
      %315 = vmatpush1.bf16.msra.mxu0 %v293
      %316 = vmatprep.subr.bf16.mxu0 0
      %317 = vmatpush1.bf16.msra.mxu0 %v292
      %318 = vmatprep.subr.bf16.mxu0 0
      %319 = vmatpush1.bf16.msra.mxu0 %v291
      %320 = vmatprep.subr.bf16.mxu0 0
      %321 = vmatpush1.bf16.msra.mxu0 %v290
      %322 = vmatprep.subr.bf16.mxu0 0
      %323 = vmatpush1.bf16.msra.mxu0 %v289
      %324 = vmatprep.subr.bf16.mxu0 0
      %325 = vmatpush1.bf16.msra.mxu0 %v288
      %326 = vmatprep.subr.bf16.mxu0 0
      %327 = vmatpush1.bf16.msra.mxu0 %v287
      %328 = vmatprep.subr.bf16.mxu0 0
      %329 = vmatpush2.bf16.msra.mxu0 0
      %330 = vmatprep.subr.bf16.mxu0 0
      %331 = vmatpush2.bf16.msra.mxu0 0
      %332 = vmatprep.subr.bf16.mxu0 0
      %333 = vmatpush2.bf16.msra.mxu0 0
      %334 = vmatprep.subr.bf16.mxu0 0
      %335 = vmatpush2.bf16.msra.mxu0 0
      %336 = vmatprep.subr.bf16.mxu0 0
      %337 = vmatpush2.bf16.msra.mxu0 0
      %338 = vmatprep.subr.bf16.mxu0 0
      %339 = vmatpush2.bf16.msra.mxu0 0
      %340 = vmatprep.subr.bf16.mxu0 0
      %341 = vmatpush2.bf16.msra.mxu0 0
      %342 = vmatprep.subr.bf16.mxu0 0
      %343 = vmatpush2.bf16.msra.mxu0 %v295
      %344 = vmatprep.mubr.bf16.mxu0 %v307
      %345 = vmatmul.mubr.bf16.gmra.mxu0 %v245
      %v346 = vpop.f32.mrf.mxu0
      %v347 = vadd.f32 0.0, %v346
      %v348 = vpop.f32.mrf.mxu0
      %v349 = vpop.f32.mrf.mxu0
      %v350 = vadd.f32 0.0, %v349
      %v351 = vpop.f32.mrf.mxu0
      %352 = vmatprep.mubr.bf16.mxu0 %v310
      %353 = vmatmul.mubr.bf16.gmra.mxu0 %v247
      %v354 = vpop.f32.mrf.mxu0
      %v355 = vadd.f32 0.0, %v354
      %v356 = vpop.f32.mrf.mxu0
      %v357 = vpop.f32.mrf.mxu0
      %v358 = vadd.f32 0.0, %v357
      %v359 = vpop.f32.mrf.mxu0
      %360 = vdwg.mxu0
      %p361 = scmp.eq.s32.totalorder %s19, 0
      // Predicated region
      $region37: #{spec_encoder_forward.4} parent=35 // pred_check
        %p362 = pneg %p361
      $region38: #{spec_encoder_forward.4} parent=35 // pred_check_branch
        %364 = sbr.rel (%p362) target = $region40
      $region39: #{spec_encoder_forward.4} parent=35 // pred_region
        %p365 = scmp.eq.s32.totalorder %s20, 0
        // Predicated region
        $region41: #{spec_encoder_forward.4} parent=39 // pred_check
          %p366 = pneg %p365
        $region42: #{spec_encoder_forward.4} parent=39 // pred_check_branch
          %368 = sbr.rel (%p366) target = $region44
        $region43: #{spec_encoder_forward.4} parent=39 // pred_region
          %vm369 = vcmask 7168
          %370 = vst.msk [vmem:[#allocation2] sm:$0xff] %vm369, 0.0
          %371 = vst.msk [vmem:[#allocation2 + $0x8] sm:$0xff] %vm369, 0.0
          %372 = vst.msk [vmem:[#allocation2 + $0x10] sm:$0xff] %vm369, 0.0
          %373 = vst.msk [vmem:[#allocation2 + $0x18] sm:$0xff] %vm369, 0.0
          %374 = vst.msk [vmem:[#allocation3] sm:$0xff] %vm369, 0.0
          %375 = vst.msk [vmem:[#allocation3 + $0x8] sm:$0xff] %vm369, 0.0
          %376 = vst.msk [vmem:[#allocation3 + $0x10] sm:$0xff] %vm369, 0.0
          %377 = vst.msk [vmem:[#allocation3 + $0x18] sm:$0xff] %vm369, 0.0
        $region44: #{spec_encoder_forward.4} parent=39 // pred_fallthru
          _
        %v378 = vld [vmem:[#allocation2] sm:$0xff]
        %v379 = vld [vmem:[#allocation2 + $0x8] sm:$0xff]
        %v380 = vld [vmem:[#allocation2 + $0x10] sm:$0xff]
        %v381 = vld [vmem:[#allocation2 + $0x18] sm:$0xff]
        %vm382 = vcmask 261120
        %v383 = vsel %vm382, %v347, 0.0
        %384 = vadd.xlane.f32.xlu0 %v383
        %v385 = vpop.xlane.xlu0 %384
        %v386 = vsel %vm382, %v350, 0.0
        %387 = vadd.xlane.f32.xlu0 %v386
        %v388 = vpop.xlane.xlu0 %387
        %v389 = vsel %vm382, %v355, 0.0
        %390 = vadd.xlane.f32.xlu0 %v389
        %v391 = vpop.xlane.xlu0 %390
        %v392 = vsel %vm382, %v358, 0.0
        %393 = vadd.xlane.f32.xlu0 %v392
        %v394 = vpop.xlane.xlu0 %393
        %v395 = vadd.f32 %v378, %v385
        %v396 = vadd.f32 %v379, %v388
        %v397 = vadd.f32 %v380, %v391
        %v398 = vadd.f32 %v381, %v394
        %vm399 = vcmask 7168
        %400 = vst.msk [vmem:[#allocation2] sm:$0xff] %vm399, %v395
        %401 = vst.msk [vmem:[#allocation2 + $0x8] sm:$0xff] %vm399, %v396
        %402 = vst.msk [vmem:[#allocation2 + $0x10] sm:$0xff] %vm399, %v397
        %403 = vst.msk [vmem:[#allocation2 + $0x18] sm:$0xff] %vm399, %v398
        %v404 = vld [vmem:[#allocation3] sm:$0xff]
        %v405 = vld [vmem:[#allocation3 + $0x8] sm:$0xff]
        %v406 = vld [vmem:[#allocation3 + $0x10] sm:$0xff]
        %v407 = vld [vmem:[#allocation3 + $0x18] sm:$0xff]
        %v408 = vmul.f32 %v347, %v347
        %v409 = vmul.f32 %v350, %v350
        %v410 = vmul.f32 %v355, %v355
        %v411 = vmul.f32 %v358, %v358
        %v412 = vsel %vm382, %v408, 0.0
        %413 = vadd.xlane.f32.xlu0 %v412
        %v414 = vpop.xlane.xlu0 %413
        %v415 = vsel %vm382, %v409, 0.0
        %416 = vadd.xlane.f32.xlu0 %v415
        %v417 = vpop.xlane.xlu0 %416
        %v418 = vsel %vm382, %v410, 0.0
        %419 = vadd.xlane.f32.xlu0 %v418
        %v420 = vpop.xlane.xlu0 %419
        %v421 = vsel %vm382, %v411, 0.0
        %422 = vadd.xlane.f32.xlu0 %v421
        %v423 = vpop.xlane.xlu0 %422
        %v424 = vadd.f32 %v404, %v414
        %v425 = vadd.f32 %v405, %v417
        %v426 = vadd.f32 %v406, %v420
        %v427 = vadd.f32 %v407, %v423
        %428 = vst.msk [vmem:[#allocation3] sm:$0xff] %vm399, %v424
        %429 = vst.msk [vmem:[#allocation3 + $0x8] sm:$0xff] %vm399, %v425
        %430 = vst.msk [vmem:[#allocation3 + $0x10] sm:$0xff] %vm399, %v426
        %431 = vst.msk [vmem:[#allocation3 + $0x18] sm:$0xff] %vm399, %v427
        // Predicated region
        $region45: #{spec_encoder_forward.4} parent=39 // pred_check
          %p432 = pneg %p365
        $region46: #{spec_encoder_forward.4} parent=39 // pred_check_branch
          %434 = sbr.rel (%p432) target = $region48
        $region47: #{spec_encoder_forward.4} parent=39 // pred_region
          %v435 = vld [vmem:[#allocation2] sm:$0xff]
          %v436 = vld [vmem:[#allocation2 + $0x8] sm:$0xff]
          %v437 = vld [vmem:[#allocation2 + $0x10] sm:$0xff]
          %v438 = vld [vmem:[#allocation2 + $0x18] sm:$0xff]
          %v439 = vmul.f32 %v435, 0.03125
          %v440 = vmul.f32 %v436, 0.03125
          %v441 = vmul.f32 %v437, 0.03125
          %v442 = vmul.f32 %v438, 0.03125
          %v443 = vld [vmem:[#allocation3] sm:$0xff]
          %v444 = vld [vmem:[#allocation3 + $0x8] sm:$0xff]
          %v445 = vld [vmem:[#allocation3 + $0x10] sm:$0xff]
          %v446 = vld [vmem:[#allocation3 + $0x18] sm:$0xff]
          %v447 = vmul.f32 %v443, 0.03125
          %v448 = vmul.f32 %v444, 0.03125
          %v449 = vmul.f32 %v445, 0.03125
          %v450 = vmul.f32 %v446, 0.03125
          %v451 = vmul.f32 %v439, %v439
          %v452 = vmul.f32 %v440, %v440
          %v453 = vmul.f32 %v441, %v441
          %v454 = vmul.f32 %v442, %v442
          %v455 = vsub.f32 %v447, %v451
          %v456 = vsub.f32 %v448, %v452
          %v457 = vsub.f32 %v449, %v453
          %v458 = vsub.f32 %v450, %v454
          %v459 = vmax.f32 %v455, 0.0
          %v460 = vmax.f32 %v456, 0.0
          %v461 = vmax.f32 %v457, 0.0
          %v462 = vmax.f32 %v458, 0.0
          %v463 = vld [vmem:[%s2] sm:$0xff]
          %v464 = vld [vmem:[%s2 + $0x8] sm:$0xff]
          %v465 = vld [vmem:[%s2 + $0x10] sm:$0xff]
          %v466 = vld [vmem:[%s2 + $0x18] sm:$0xff]
          %v467 = vadd.f32 %v459, 1e-05
          %v468 = vadd.f32 %v460, 1e-05
          %v469 = vadd.f32 %v461, 1e-05
          %v470 = vadd.f32 %v462, 1e-05
          %v471 = vrsqrt.pop %v467
          %v472 = vrsqrt.pop %v468
          %v473 = vrsqrt.pop %v469
          %v474 = vrsqrt.pop %v470
          %v475 = vmul.f32 %v463, %v471
          %v476 = vmul.f32 %v464, %v472
          %v477 = vmul.f32 %v465, %v473
          %v478 = vmul.f32 %v466, %v474
          %479 = vst.msk [vmem:[#allocation4] sm:$0xff] %vm399, %v475
          %480 = vst.msk [vmem:[#allocation4 + $0x8] sm:$0xff] %vm399, %v476
          %481 = vst.msk [vmem:[#allocation4 + $0x10] sm:$0xff] %vm399, %v477
          %482 = vst.msk [vmem:[#allocation4 + $0x18] sm:$0xff] %vm399, %v478
          %v483 = vld [vmem:[%s3] sm:$0xff]
          %v484 = vld [vmem:[%s3 + $0x8] sm:$0xff]
          %v485 = vld [vmem:[%s3 + $0x10] sm:$0xff]
          %v486 = vld [vmem:[%s3 + $0x18] sm:$0xff]
          %v487 = vmul.f32 %v475, %v439
          %v488 = vmul.f32 %v476, %v440
          %v489 = vmul.f32 %v477, %v441
          %v490 = vmul.f32 %v478, %v442
          %v491 = vsub.f32 %v483, %v487
          %v492 = vsub.f32 %v484, %v488
          %v493 = vsub.f32 %v485, %v489
          %v494 = vsub.f32 %v486, %v490
          %495 = vst.msk [vmem:[#allocation5] sm:$0xff] %vm399, %v491
          %496 = vst.msk [vmem:[#allocation5 + $0x8] sm:$0xff] %vm399, %v492
          %497 = vst.msk [vmem:[#allocation5 + $0x10] sm:$0xff] %vm399, %v493
          %498 = vst.msk [vmem:[#allocation5 + $0x18] sm:$0xff] %vm399, %v494
        $region48: #{spec_encoder_forward.4} parent=39 // pred_fallthru
          _
      $region40: #{spec_encoder_forward.4} parent=35 // pred_fallthru
        _
      %p499 = scmp.eq.s32.totalorder %s19, 1
      // Predicated region
      $region49: #{spec_encoder_forward.4} parent=35 // pred_check
        %p500 = pneg %p499
      $region50: #{spec_encoder_forward.4} parent=35 // pred_check_branch
        %502 = sbr.rel (%p500) target = $region52
      $region51: #{spec_encoder_forward.4} parent=35 // pred_region
        %v503 = vld [vmem:[#allocation4] sm:$0xff]
        %v504 = vld [vmem:[#allocation4 + $0x8] sm:$0xff]
        %v505 = vld [vmem:[#allocation4 + $0x10] sm:$0xff]
        %v506 = vld [vmem:[#allocation4 + $0x18] sm:$0xff]
        %508 = vset.pattern.permute.xlu0 0
        %509 = vperm.xlu0 %508, %v503
        %v510 = vpop.permute.xlu0 %509
        %513 = vset.pattern.permute.xlu0 0
        %514 = vperm.xlu0 %513, %v504
        %v515 = vpop.permute.xlu0 %514
        %518 = vset.pattern.permute.xlu0 0
        %519 = vperm.xlu0 %518, %v505
        %v520 = vpop.permute.xlu0 %519
        %523 = vset.pattern.permute.xlu0 0
        %524 = vperm.xlu0 %523, %v506
        %v525 = vpop.permute.xlu0 %524
        %v527 = vmul.f32 %v347, %v510
        %v528 = vmul.f32 %v350, %v515
        %v529 = vmul.f32 %v355, %v520
        %v530 = vmul.f32 %v358, %v525
        %v531 = vld [vmem:[#allocation5] sm:$0xff]
        %v532 = vld [vmem:[#allocation5 + $0x8] sm:$0xff]
        %v533 = vld [vmem:[#allocation5 + $0x10] sm:$0xff]
        %v534 = vld [vmem:[#allocation5 + $0x18] sm:$0xff]
        %536 = vset.pattern.permute.xlu0 0
        %537 = vperm.xlu0 %536, %v531
        %v538 = vpop.permute.xlu0 %537
        %541 = vset.pattern.permute.xlu0 0
        %542 = vperm.xlu0 %541, %v532
        %v543 = vpop.permute.xlu0 %542
        %546 = vset.pattern.permute.xlu0 0
        %547 = vperm.xlu0 %546, %v533
        %v548 = vpop.permute.xlu0 %547
        %551 = vset.pattern.permute.xlu0 0
        %552 = vperm.xlu0 %551, %v534
        %v553 = vpop.permute.xlu0 %552
        %v555 = vadd.f32 %v527, %v538
        %v556 = vadd.f32 %v528, %v543
        %v557 = vadd.f32 %v529, %v548
        %v558 = vadd.f32 %v530, %v553
        %v559 = vmax.f32 %v555, 0.0
        %v560 = vmax.f32 %v556, 0.0
        %v561 = vmax.f32 %v557, 0.0
        %v562 = vmax.f32 %v558, 0.0
        %vm563 = vcmask 261120
        %564 = vst.msk [vmem:[%s208] sm:$0xff] %vm563, %v559
        %565 = vst.msk [vmem:[%s208 + $0x8] sm:$0xff] %vm563, %v560
        %566 = vst.msk [vmem:[%s208 + $0x10] sm:$0xff] %vm563, %v561
        %567 = vst.msk [vmem:[%s208 + $0x18] sm:$0xff] %vm563, %v562
      $region52: #{spec_encoder_forward.4} parent=35 // pred_fallthru
        _
      %s568 = smul.u32 %s20, %s19
      %p569 = scmp.lt.s32.totalorder %s568, 0
      %s570 = scalar_select %p569, %s568, 0
      %s571 = smul.addr %s570, 8
      %s572 = scalar_lea.vmem %s4, %s571
      // Predicated region
      $region53: #{spec_encoder_forward.4} parent=35 // pred_check
        %p573 = pneg %p136
      $region54: #{spec_encoder_forward.4} parent=35 // pred_check_branch
        %575 = sbr.rel (%p573) target = $region56
      $region55: #{spec_encoder_forward.4} parent=35 // pred_region
        %s576 = smul.u32 %s20, %s19
      $region56: #{spec_encoder_forward.4} parent=35 // pred_fallthru
        _
    $region36: #{spec_encoder_forward.4} parent=5 // pred_fallthru
      _
    %p577 = scmp.le.s32.totalorder 2, %s10
    // Predicated region
    $region57: #{spec_encoder_forward.4} parent=5 // pred_check
      %p578 = pneg %p577
    $region58: #{spec_encoder_forward.4} parent=5 // pred_check_branch
      %580 = sbr.rel (%p578) target = $region60
    $region59: #{spec_encoder_forward.4} parent=5 // pred_region
      %s581 = ssub.s32 %s10, 2
      // Predicated region
      $region61: #{spec_encoder_forward.4} parent=59 // pred_check
        %p582 = pneg %p142
      $region62: #{spec_encoder_forward.4} parent=59 // pred_check_branch
        %584 = sbr.rel (%p582) target = $region64
      $region63: #{spec_encoder_forward.4} parent=59 // pred_region
        %s585 = smul.u32 %s22, %s21
        %p586 = scmp.lt.s32.totalorder %s585, 0
        %s587 = scalar_select %p586, %s585, 0
        %s588 = smul.addr %s587, 8
        %s589 = scalar_lea.vmem %s4, %s588
      $region64: #{spec_encoder_forward.4} parent=59 // pred_fallthru
        _
    $region60: #{spec_encoder_forward.4} parent=5 // pred_fallthru
      _
  $region6: #{spec_encoder_forward.4} parent=0 // loop_footer
    %s14 = sadd.s32 1, %s10
  $region7: #{spec_encoder_forward.4} parent=0 // loop_footer_branch
    %9 = sbr.rel target = $region3
  $region8: #{spec_encoder_forward.4} parent=0 // loop_exit
    _

// kernel: spec_encoder_forward.3
$region0: #{spec_encoder_forward.3}
  #allocation0 [shape = 'u32[]', space=smem, size = 0x4, offset = 0x4, fixed_abs, tag = 'smem constant byte address 0x4 - core index']
  #allocation1 [shape = 'u32[144,128]{1,0:T(1,128)}', space=vmem, size = 0x12000, scoped, tag = 'internal scratch']
  #allocation2 [shape = 'f32[16,1]{1,0:T(8,128)}', space=vmem, size = 0x2000, scoped, tag = 'scratch operand']
  #allocation3 [shape = 'f32[16,1]{1,0:T(8,128)}', space=vmem, size = 0x2000, scoped, tag = 'scratch operand']
  #allocation4 [shape = 'f32[16,1]{1,0:T(8,128)}', space=vmem, size = 0x2000, scoped, tag = 'scratch operand']
  #allocation5 [shape = 'f32[16,1]{1,0:T(8,128)}', space=vmem, size = 0x2000, scoped, tag = 'scratch operand']
  %s0 = inlined_call_operand.vmem [shape: bf16[16,27], index: 0, kind: input, shape index: {}]
  %s1 = inlined_call_operand.vmem [shape: bf16[27,128], index: 1, kind: input, shape index: {}]
  %s2 = inlined_call_operand.vmem [shape: f32[16,1], index: 2, kind: input, shape index: {}]
  %s3 = inlined_call_operand.vmem [shape: f32[16,1], index: 3, kind: input, shape index: {}]
  %s4 = inlined_call_operand.vmem [shape: f32[16,128], index: 4, kind: output, shape index: {}]
  %s5 = sld [smem:[#allocation0]]
  $region65: #{spec_encoder_forward.3} parent=0
    _
  %s7 = ssub.s32 1, %s5
  %s8 = scalar_select 0, %s7, %s5
  loop: start=0, step=1, limit=4
  $region2: #{spec_encoder_forward.3} parent=0 // loop_pre_header
    _
  $region3: #{spec_encoder_forward.3} parent=0 // loop_header
    %s10 = sphi 0, %s14
    %p11 = scmp.ge.s32.totalorder %s10, 4
    %s17 = sphi 0, %s29
    %s18 = sphi 0, %s25
    %s19 = sphi 0, %s17
    %s20 = sphi 0, %s18
    %s21 = sphi 0, %s19
    %s22 = sphi 0, %s20
    %s30 = sphi 0, %s30
    %s32 = sphi 0, %s30
    %s33 = sphi 0, %s32
    %s47 = sphi 0, %s33
    %s53 = sphi 0, %s55
    %s56 = sphi 0, %s53
    %s57 = sphi 0, %s56
    %s73 = sphi 0, %s57
    %s77 = sphi 0, %s77
    %s79 = sphi 0, %s77
    %s80 = sphi 0, %s79
    %s94 = sphi 0, %s80
    %s98 = sphi 0, %s98
    %s100 = sphi 0, %s98
    %s101 = sphi 0, %s100
    %s115 = sphi 0, %s101
    %s123 = sphi 0, %s125
    %s126 = sphi 0, %s123
    %s127 = sphi 0, %s126
    %s143 = sphi 0, %s127
  $region4: #{spec_encoder_forward.3} parent=0 // loop_header_branch
    %13 = sbr.rel (%p11) target = $region8
  $region5: #{spec_encoder_forward.3} parent=0 // loop_body
    %s15 = ssub.s32 %s10, 1
    %s16 = ssub.s32 %s10, 2
    %s23 = sadd.s32 1, %s18
    %p24 = scmp.ge.s32.totalorder %s23, 1
    %s25 = scalar_select %p24, 0, %s23
    %s26 = sadd.s32 1, %s17
    %s27 = scalar_select %p24, %s26, %s17
    %p28 = scmp.ge.s32.totalorder %s27, 2
    %s29 = scalar_select %p28, 0, %s27
    %s31 = sadd.s32 %s30, 1
    %p34 = scmp.eq.s32.totalorder %s10, 1
    %p35 = scmp.ne.s32.totalorder %s30, %s32
    %p36 = scmp.eq.s32.totalorder %s10, 0
    %p37 = por %p35, %p36
    %p38 = scmp.ne.s32.totalorder %s30, %s32
    %p39 = scmp.eq.s32.totalorder %s15, 1
    %p40 = por %p38, %p39
    %p41 = scmp.ne.s32.totalorder %s32, %s33
    %p42 = scmp.eq.s32.totalorder %s15, 0
    %p43 = por %p41, %p42
    %p44 = scmp.ne.s32.totalorder %s32, %s33
    %p45 = scmp.eq.s32.totalorder %s16, 1
    %p46 = por %p44, %p45
    %p48 = scmp.ne.s32.totalorder %s33, %s47
    %p49 = scmp.eq.s32.totalorder %s16, 0
    %p50 = por %p48, %p49
    %s51 = ssub.s32 %s18, %s25
    %p52 = scmp.eq.s32.totalorder %s51, 0
    %s54 = sadd.s32 %s53, 1
    %s55 = scalar_select %p52, %s53, %s54
    %p58 = pneg %p52
    %p59 = scmp.eq.s32.totalorder %s10, 1
    %p60 = por %p58, %p59
    %p61 = scmp.ne.s32.totalorder %s53, %s56
    %p62 = scmp.eq.s32.totalorder %s10, 0
    %p63 = por %p61, %p62
    %p64 = scmp.ne.s32.totalorder %s53, %s56
    %p65 = scmp.eq.s32.totalorder %s15, 1
    %p66 = por %p64, %p65
    %p67 = scmp.ne.s32.totalorder %s56, %s57
    %p68 = scmp.eq.s32.totalorder %s15, 0
    %p69 = por %p67, %p68
    %p70 = scmp.ne.s32.totalorder %s56, %s57
    %p71 = scmp.eq.s32.totalorder %s16, 1
    %p72 = por %p70, %p71
    %p74 = scmp.ne.s32.totalorder %s57, %s73
    %p75 = scmp.eq.s32.totalorder %s16, 0
    %p76 = por %p74, %p75
    %s78 = sadd.s32 %s77, 1
    %p81 = scmp.eq.s32.totalorder %s10, 1
    %p82 = scmp.ne.s32.totalorder %s77, %s79
    %p83 = scmp.eq.s32.totalorder %s10, 0
    %p84 = por %p82, %p83
    %p85 = scmp.ne.s32.totalorder %s77, %s79
    %p86 = scmp.eq.s32.totalorder %s15, 1
    %p87 = por %p85, %p86
    %p88 = scmp.ne.s32.totalorder %s79, %s80
    %p89 = scmp.eq.s32.totalorder %s15, 0
    %p90 = por %p88, %p89
    %p91 = scmp.ne.s32.totalorder %s79, %s80
    %p92 = scmp.eq.s32.totalorder %s16, 1
    %p93 = por %p91, %p92
    %p95 = scmp.ne.s32.totalorder %s80, %s94
    %p96 = scmp.eq.s32.totalorder %s16, 0
    %p97 = por %p95, %p96
    %s99 = sadd.s32 %s98, 1
    %p102 = scmp.eq.s32.totalorder %s10, 1
    %p103 = scmp.ne.s32.totalorder %s98, %s100
    %p104 = scmp.eq.s32.totalorder %s10, 0
    %p105 = por %p103, %p104
    %p106 = scmp.ne.s32.totalorder %s98, %s100
    %p107 = scmp.eq.s32.totalorder %s15, 1
    %p108 = por %p106, %p107
    %p109 = scmp.ne.s32.totalorder %s100, %s101
    %p110 = scmp.eq.s32.totalorder %s15, 0
    %p111 = por %p109, %p110
    %p112 = scmp.ne.s32.totalorder %s100, %s101
    %p113 = scmp.eq.s32.totalorder %s16, 1
    %p114 = por %p112, %p113
    %p116 = scmp.ne.s32.totalorder %s101, %s115
    %p117 = scmp.eq.s32.totalorder %s16, 0
    %p118 = por %p116, %p117
    %s119 = smul.u32 %s18, %s17
    %s120 = smul.u32 %s25, %s29
    %s121 = ssub.s32 %s119, %s120
    %p122 = scmp.eq.s32.totalorder %s121, 0
    %s124 = sadd.s32 %s123, 1
    %s125 = scalar_select %p122, %s123, %s124
    %p128 = pneg %p122
    %p129 = scmp.eq.s32.totalorder %s10, 1
    %p130 = por %p128, %p129
    %p131 = scmp.ne.s32.totalorder %s123, %s126
    %p132 = scmp.eq.s32.totalorder %s10, 0
    %p133 = por %p131, %p132
    %p134 = scmp.ne.s32.totalorder %s123, %s126
    %p135 = scmp.eq.s32.totalorder %s15, 1
    %p136 = por %p134, %p135
    %p137 = scmp.ne.s32.totalorder %s126, %s127
    %p138 = scmp.eq.s32.totalorder %s15, 0
    %p139 = por %p137, %p138
    %p140 = scmp.ne.s32.totalorder %s126, %s127
    %p141 = scmp.eq.s32.totalorder %s16, 1
    %p142 = por %p140, %p141
    %p144 = scmp.ne.s32.totalorder %s127, %s143
    %p145 = scmp.eq.s32.totalorder %s16, 0
    %p146 = por %p144, %p145
    %p147 = scmp.le.s32.totalorder 1, %s10
    %p148 = scmp.lt.s32.totalorder %s10, 3
    %p149 = pnand %p147, %p148
    %p150 = pneg %p149
    // Predicated region
    $region9: #{spec_encoder_forward.3} parent=5 // pred_check
      _
    $region10: #{spec_encoder_forward.3} parent=5 // pred_check_branch
      %152 = sbr.rel (%p149) target = $region12
    $region11: #{spec_encoder_forward.3} parent=5 // pred_region
      %s153 = ssub.s32 %s10, 1
      // Predicated region
      $region13: #{spec_encoder_forward.3} parent=11 // pred_check
        %p154 = pneg %p43
      $region14: #{spec_encoder_forward.3} parent=11 // pred_check_branch
        %156 = sbr.rel (%p154) target = $region16
      $region15: #{spec_encoder_forward.3} parent=11 // pred_region
        _
      $region16: #{spec_encoder_forward.3} parent=11 // pred_fallthru
        _
      // Predicated region
      $region17: #{spec_encoder_forward.3} parent=11 // pred_check
        %p157 = pneg %p69
      $region18: #{spec_encoder_forward.3} parent=11 // pred_check_branch
        %159 = sbr.rel (%p157) target = $region20
      $region19: #{spec_encoder_forward.3} parent=11 // pred_region
        %p160 = scmp.lt.s32.totalorder %s20, 0
        %s161 = scalar_select %p160, %s20, 0
        %s162 = smul.addr %s161, 4
        %s163 = scalar_lea.vmem %s1, %s162
      $region20: #{spec_encoder_forward.3} parent=11 // pred_fallthru
        _
      // Predicated region
      $region21: #{spec_encoder_forward.3} parent=11 // pred_check
        %p164 = pneg %p90
      $region22: #{spec_encoder_forward.3} parent=11 // pred_check_branch
        %166 = sbr.rel (%p164) target = $region24
      $region23: #{spec_encoder_forward.3} parent=11 // pred_region
        _
      $region24: #{spec_encoder_forward.3} parent=11 // pred_fallthru
        _
      // Predicated region
      $region25: #{spec_encoder_forward.3} parent=11 // pred_check
        %p167 = pneg %p111
      $region26: #{spec_encoder_forward.3} parent=11 // pred_check_branch
        %169 = sbr.rel (%p167) target = $region28
      $region27: #{spec_encoder_forward.3} parent=11 // pred_region
        _
      $region28: #{spec_encoder_forward.3} parent=11 // pred_fallthru
        _
    $region12: #{spec_encoder_forward.3} parent=5 // pred_fallthru
      _
    %p170 = scmp.lt.s32.totalorder %s10, 2
    // Predicated region
    $region29: #{spec_encoder_forward.3} parent=5 // pred_check
      %p171 = pneg %p170
    $region30: #{spec_encoder_forward.3} parent=5 // pred_check_branch
      %173 = sbr.rel (%p171) target = $region32
    $region31: #{spec_encoder_forward.3} parent=5 // pred_region
      _
    $region32: #{spec_encoder_forward.3} parent=5 // pred_fallthru
      _
    %p174 = scmp.le.s32.totalorder 1, %s10
    %p175 = scmp.lt.s32.totalorder %s10, 3
    %p176 = pnand %p174, %p175
    %p177 = pneg %p176
    // Predicated region
    $region33: #{spec_encoder_forward.3} parent=5 // pred_check
      _
    $region34: #{spec_encoder_forward.3} parent=5 // pred_check_branch
      %179 = sbr.rel (%p176) target = $region36
    $region35: #{spec_encoder_forward.3} parent=5 // pred_region
      %s180 = ssub.s32 %s10, 1
      %p181 = pneg %p43
      %p182 = pneg %p40
      %p183 = scmp.lt.s32.totalorder %s20, 0
      %s184 = scalar_select %p183, %s20, 0
      %s185 = smul.addr %s184, 4
      %s186 = scalar_lea.vmem %s1, %s185
      %p187 = pneg %p69
      %p188 = pneg %p66
      %p189 = pneg %p90
      %p190 = pneg %p87
      %p191 = pneg %p111
      %p192 = pneg %p108
      %p193 = pneg %p139
      %p194 = pneg %p136
      %s195 = smul.u32 %s20, %s19
      %p196 = scmp.lt.s32.totalorder %s195, 0
      %s197 = scalar_select %p196, %s195, 0
      %s198 = smul.addr %s197, 8
      %s199 = scalar_lea.vmem %s4, %s198
      %p200 = scmp.lt.s32.totalorder %s20, 0
      %s201 = scalar_select %p200, %s20, 0
      %s202 = smul.addr %s201, 4
      %s203 = scalar_lea.vmem %s1, %s202
      %s204 = smul.u32 %s20, %s19
      %p205 = scmp.lt.s32.totalorder %s204, 0
      %s206 = scalar_select %p205, %s204, 0
      %s207 = smul.addr %s206, 8
      %s208 = scalar_lea.vmem %s4, %s207
      %s209 = smul.u32 %s20, %s19
      %v211 = vld [vmem:[%s0] sm:$0xf]
      %v212 = vld [vmem:[%s0 + $0x4] sm:$0xf]
      %v213 = vld [vmem:[%s203] sm:$0xf]
      %v214 = vld [vmem:[%s203 + $0x4] sm:$0xf]
      %v215 = vld [vmem:[%s203 + $0x8] sm:$0xf]
      %v216 = vld [vmem:[%s203 + $0xc] sm:$0x3]
      %v219 = vunpack.c.l.b16 %v211
      %v220 = vunpack.c.l.b16 %v212
      %v221 = vpack.c.b16 %v220, %v219
      %v226 = vunpack.c.l.b16 %v213
      %v227 = vunpack.c.l.b16 %v214
      %v228 = vunpack.c.l.b16 %v215
      %v229 = vunpack.c.l.b16 %v216
      %v230 = vpack.c.b16 %v227, %v226
      %v231 = vpack.c.b16 %v229, %v228
      %vm233 = vcmask 220160
      %v235 = vsel %vm233, %v221, 0
      %vm237 = vcmask 1044480
      %vm238 = vcmask 1045504
      %v239 = vsel %vm237, 4294967295, 65535
      %v240 = vsel %vm238, %v239, 0
      %v242 = vand.u32 %v231, %v240
      %244 = vmatprep.subr.bf16.mxu0 0
      %245 = vmatpush1.bf16.msra.mxu0 0
      %246 = vmatprep.subr.bf16.mxu0 0
      %247 = vmatpush1.bf16.msra.mxu0 0
      %248 = vmatprep.subr.bf16.mxu0 0
      %249 = vmatpush1.bf16.msra.mxu0 0
      %250 = vmatprep.subr.bf16.mxu0 0
      %251 = vmatpush1.bf16.msra.mxu0 0
      %252 = vmatprep.subr.bf16.mxu0 0
      %253 = vmatpush1.bf16.msra.mxu0 0
      %254 = vmatprep.subr.bf16.mxu0 0
      %255 = vmatpush1.bf16.msra.mxu0 0
      %256 = vmatprep.subr.bf16.mxu0 0
      %257 = vmatpush1.bf16.msra.mxu0 %v242
      %258 = vmatprep.subr.bf16.mxu0 0
      %259 = vmatpush1.bf16.msra.mxu0 %v230
      %260 = vmatprep.subr.bf16.mxu0 0
      %261 = vmatpush2.bf16.msra.mxu0 0
      %262 = vmatprep.subr.bf16.mxu0 0
      %263 = vmatpush2.bf16.msra.mxu0 0
      %264 = vmatprep.subr.bf16.mxu0 0
      %265 = vmatpush2.bf16.msra.mxu0 0
      %266 = vmatprep.subr.bf16.mxu0 0
      %267 = vmatpush2.bf16.msra.mxu0 0
      %268 = vmatprep.subr.bf16.mxu0 0
      %269 = vmatpush2.bf16.msra.mxu0 0
      %270 = vmatprep.subr.bf16.mxu0 0
      %271 = vmatpush2.bf16.msra.mxu0 0
      %272 = vmatprep.subr.bf16.mxu0 0
      %273 = vmatpush2.bf16.msra.mxu0 0
      %274 = vmatprep.subr.bf16.mxu0 0
      %275 = vmatpush2.bf16.msra.mxu0 0
      %276 = vmatprep.mubr.bf16.mxu0 0
      %277 = vmatmul.mubr.bf16.gmra.mxu0 %v235
      %v278 = vpop.f32.mrf.mxu0
      %v279 = vadd.f32 0.0, %v278
      %v280 = vpop.f32.mrf.mxu0
      %v281 = vpop.f32.mrf.mxu0
      %v282 = vadd.f32 0.0, %v281
      %v283 = vpop.f32.mrf.mxu0
      %284 = vdwg.mxu0
      %p285 = scmp.eq.s32.totalorder %s19, 0
      // Predicated region
      $region37: #{spec_encoder_forward.3} parent=35 // pred_check
        %p286 = pneg %p285
      $region38: #{spec_encoder_forward.3} parent=35 // pred_check_branch
        %288 = sbr.rel (%p286) target = $region40
      $region39: #{spec_encoder_forward.3} parent=35 // pred_region
        %p289 = scmp.eq.s32.totalorder %s20, 0
        // Predicated region
        $region41: #{spec_encoder_forward.3} parent=39 // pred_check
          %p290 = pneg %p289
        $region42: #{spec_encoder_forward.3} parent=39 // pred_check_branch
          %292 = sbr.rel (%p290) target = $region44
        $region43: #{spec_encoder_forward.3} parent=39 // pred_region
          %vm293 = vcmask 7168
          %294 = vst.msk [vmem:[#allocation2] sm:$0xff] %vm293, 0.0
          %295 = vst.msk [vmem:[#allocation2 + $0x8] sm:$0xff] %vm293, 0.0
          %296 = vst.msk [vmem:[#allocation3] sm:$0xff] %vm293, 0.0
          %297 = vst.msk [vmem:[#allocation3 + $0x8] sm:$0xff] %vm293, 0.0
        $region44: #{spec_encoder_forward.3} parent=39 // pred_fallthru
          _
        %v298 = vld [vmem:[#allocation2] sm:$0xff]
        %v299 = vld [vmem:[#allocation2 + $0x8] sm:$0xff]
        %300 = vadd.xlane.f32.xlu0 %v279
        %v301 = vpop.xlane.xlu0 %300
        %302 = vadd.xlane.f32.xlu0 %v282
        %v303 = vpop.xlane.xlu0 %302
        %v304 = vadd.f32 %v298, %v301
        %v305 = vadd.f32 %v299, %v303
        %vm306 = vcmask 7168
        %307 = vst.msk [vmem:[#allocation2] sm:$0xff] %vm306, %v304
        %308 = vst.msk [vmem:[#allocation2 + $0x8] sm:$0xff] %vm306, %v305
        %v309 = vld [vmem:[#allocation3] sm:$0xff]
        %v310 = vld [vmem:[#allocation3 + $0x8] sm:$0xff]
        %v311 = vmul.f32 %v279, %v279
        %v312 = vmul.f32 %v282, %v282
        %313 = vadd.xlane.f32.xlu0 %v311
        %v314 = vpop.xlane.xlu0 %313
        %315 = vadd.xlane.f32.xlu0 %v312
        %v316 = vpop.xlane.xlu0 %315
        %v317 = vadd.f32 %v309, %v314
        %v318 = vadd.f32 %v310, %v316
        %319 = vst.msk [vmem:[#allocation3] sm:$0xff] %vm306, %v317
        %320 = vst.msk [vmem:[#allocation3 + $0x8] sm:$0xff] %vm306, %v318
        // Predicated region
        $region45: #{spec_encoder_forward.3} parent=39 // pred_check
          %p321 = pneg %p289
        $region46: #{spec_encoder_forward.3} parent=39 // pred_check_branch
          %323 = sbr.rel (%p321) target = $region48
        $region47: #{spec_encoder_forward.3} parent=39 // pred_region
          %v324 = vld [vmem:[#allocation2] sm:$0xff]
          %v325 = vld [vmem:[#allocation2 + $0x8] sm:$0xff]
          %v326 = vmul.f32 %v324, 0.0078125
          %v327 = vmul.f32 %v325, 0.0078125
          %v328 = vld [vmem:[#allocation3] sm:$0xff]
          %v329 = vld [vmem:[#allocation3 + $0x8] sm:$0xff]
          %v330 = vmul.f32 %v328, 0.0078125
          %v331 = vmul.f32 %v329, 0.0078125
          %v332 = vmul.f32 %v326, %v326
          %v333 = vmul.f32 %v327, %v327
          %v334 = vsub.f32 %v330, %v332
          %v335 = vsub.f32 %v331, %v333
          %v336 = vmax.f32 %v334, 0.0
          %v337 = vmax.f32 %v335, 0.0
          %v338 = vld [vmem:[%s2] sm:$0xff]
          %v339 = vld [vmem:[%s2 + $0x8] sm:$0xff]
          %v340 = vadd.f32 %v336, 1e-05
          %v341 = vadd.f32 %v337, 1e-05
          %v342 = vrsqrt.pop %v340
          %v343 = vrsqrt.pop %v341
          %v344 = vmul.f32 %v338, %v342
          %v345 = vmul.f32 %v339, %v343
          %346 = vst.msk [vmem:[#allocation4] sm:$0xff] %vm306, %v344
          %347 = vst.msk [vmem:[#allocation4 + $0x8] sm:$0xff] %vm306, %v345
          %v348 = vld [vmem:[%s3] sm:$0xff]
          %v349 = vld [vmem:[%s3 + $0x8] sm:$0xff]
          %v350 = vmul.f32 %v344, %v326
          %v351 = vmul.f32 %v345, %v327
          %v352 = vsub.f32 %v348, %v350
          %v353 = vsub.f32 %v349, %v351
          %354 = vst.msk [vmem:[#allocation5] sm:$0xff] %vm306, %v352
          %355 = vst.msk [vmem:[#allocation5 + $0x8] sm:$0xff] %vm306, %v353
        $region48: #{spec_encoder_forward.3} parent=39 // pred_fallthru
          _
      $region40: #{spec_encoder_forward.3} parent=35 // pred_fallthru
        _
      %p356 = scmp.eq.s32.totalorder %s19, 1
      // Predicated region
      $region49: #{spec_encoder_forward.3} parent=35 // pred_check
        %p357 = pneg %p356
      $region50: #{spec_encoder_forward.3} parent=35 // pred_check_branch
        %359 = sbr.rel (%p357) target = $region52
      $region51: #{spec_encoder_forward.3} parent=35 // pred_region
        %v360 = vld [vmem:[#allocation4] sm:$0xff]
        %v361 = vld [vmem:[#allocation4 + $0x8] sm:$0xff]
        %363 = vset.pattern.permute.xlu0 0
        %364 = vperm.xlu0 %363, %v360
        %v365 = vpop.permute.xlu0 %364
        %368 = vset.pattern.permute.xlu0 0
        %369 = vperm.xlu0 %368, %v361
        %v370 = vpop.permute.xlu0 %369
        %v372 = vmul.f32 %v279, %v365
        %v373 = vmul.f32 %v282, %v370
        %v374 = vld [vmem:[#allocation5] sm:$0xff]
        %v375 = vld [vmem:[#allocation5 + $0x8] sm:$0xff]
        %377 = vset.pattern.permute.xlu0 0
        %378 = vperm.xlu0 %377, %v374
        %v379 = vpop.permute.xlu0 %378
        %382 = vset.pattern.permute.xlu0 0
        %383 = vperm.xlu0 %382, %v375
        %v384 = vpop.permute.xlu0 %383
        %v386 = vadd.f32 %v372, %v379
        %v387 = vadd.f32 %v373, %v384
        %v388 = vmax.f32 %v386, 0.0
        %v389 = vmax.f32 %v387, 0.0
        %390 = vst [vmem:[%s208] sm:$0xff] %v388
        %391 = vst [vmem:[%s208 + $0x8] sm:$0xff] %v389
      $region52: #{spec_encoder_forward.3} parent=35 // pred_fallthru
        _
      %s392 = smul.u32 %s20, %s19
      %p393 = scmp.lt.s32.totalorder %s392, 0
      %s394 = scalar_select %p393, %s392, 0
      %s395 = smul.addr %s394, 8
      %s396 = scalar_lea.vmem %s4, %s395
      // Predicated region
      $region53: #{spec_encoder_forward.3} parent=35 // pred_check
        %p397 = pneg %p136
      $region54: #{spec_encoder_forward.3} parent=35 // pred_check_branch
        %399 = sbr.rel (%p397) target = $region56
      $region55: #{spec_encoder_forward.3} parent=35 // pred_region
        %s400 = smul.u32 %s20, %s19
      $region56: #{spec_encoder_forward.3} parent=35 // pred_fallthru
        _
    $region36: #{spec_encoder_forward.3} parent=5 // pred_fallthru
      _
    %p401 = scmp.le.s32.totalorder 2, %s10
    // Predicated region
    $region57: #{spec_encoder_forward.3} parent=5 // pred_check
      %p402 = pneg %p401
    $region58: #{spec_encoder_forward.3} parent=5 // pred_check_branch
      %404 = sbr.rel (%p402) target = $region60
    $region59: #{spec_encoder_forward.3} parent=5 // pred_region
      %s405 = ssub.s32 %s10, 2
      // Predicated region
      $region61: #{spec_encoder_forward.3} parent=59 // pred_check
        %p406 = pneg %p142
      $region62: #{spec_encoder_forward.3} parent=59 // pred_check_branch
        %408 = sbr.rel (%p406) target = $region64
      $region63: #{spec_encoder_forward.3} parent=59 // pred_region
        %s409 = smul.u32 %s22, %s21
        %p410 = scmp.lt.s32.totalorder %s409, 0
        %s411 = scalar_select %p410, %s409, 0
        %s412 = smul.addr %s411, 8
        %s413 = scalar_lea.vmem %s4, %s412
      $region64: #{spec_encoder_forward.3} parent=59 // pred_fallthru
        _
    $region60: #{spec_encoder_forward.3} parent=5 // pred_fallthru
      _
  $region6: #{spec_encoder_forward.3} parent=0 // loop_footer
    %s14 = sadd.s32 1, %s10
  $region7: #{spec_encoder_forward.3} parent=0 // loop_footer_branch
    %9 = sbr.rel target = $region3
  $region8: #{spec_encoder_forward.3} parent=0 // loop_exit
    _

// kernel: spec_encoder_forward.5
$region0: #{spec_encoder_forward.5}
  #allocation0 [shape = 'u32[]', space=smem, size = 0x4, offset = 0x4, fixed_abs, tag = 'smem constant byte address 0x4 - core index']
  #allocation1 [shape = 'u32[144,128]{1,0:T(1,128)}', space=vmem, size = 0x12000, scoped, tag = 'internal scratch']
  #allocation2 [shape = 'f32[64,1]{1,0:T(8,128)}', space=vmem, size = 0x8000, scoped, tag = 'scratch operand']
  #allocation3 [shape = 'f32[64,1]{1,0:T(8,128)}', space=vmem, size = 0x8000, scoped, tag = 'scratch operand']
  #allocation4 [shape = 'f32[64,1]{1,0:T(8,128)}', space=vmem, size = 0x8000, scoped, tag = 'scratch operand']
  #allocation5 [shape = 'f32[64,1]{1,0:T(8,128)}', space=vmem, size = 0x8000, scoped, tag = 'scratch operand']
  %s0 = inlined_call_operand.vmem [shape: bf16[64,288], index: 0, kind: input, shape index: {}]
  %s1 = inlined_call_operand.vmem [shape: bf16[288,8], index: 1, kind: input, shape index: {}]
  %s2 = inlined_call_operand.vmem [shape: f32[64,1], index: 2, kind: input, shape index: {}]
  %s3 = inlined_call_operand.vmem [shape: f32[64,1], index: 3, kind: input, shape index: {}]
  %s4 = inlined_call_operand.vmem [shape: f32[64,8], index: 4, kind: output, shape index: {}]
  %s5 = sld [smem:[#allocation0]]
  $region65: #{spec_encoder_forward.5} parent=0
    _
  %s7 = ssub.s32 1, %s5
  %s8 = scalar_select 0, %s7, %s5
  loop: start=0, step=1, limit=4
  $region2: #{spec_encoder_forward.5} parent=0 // loop_pre_header
    _
  $region3: #{spec_encoder_forward.5} parent=0 // loop_header
    %s10 = sphi 0, %s14
    %p11 = scmp.ge.s32.totalorder %s10, 4
    %s17 = sphi 0, %s29
    %s18 = sphi 0, %s25
    %s19 = sphi 0, %s17
    %s20 = sphi 0, %s18
    %s21 = sphi 0, %s19
    %s22 = sphi 0, %s20
    %s30 = sphi 0, %s30
    %s32 = sphi 0, %s30
    %s33 = sphi 0, %s32
    %s47 = sphi 0, %s33
    %s53 = sphi 0, %s55
    %s56 = sphi 0, %s53
    %s57 = sphi 0, %s56
    %s73 = sphi 0, %s57
    %s77 = sphi 0, %s77
    %s79 = sphi 0, %s77
    %s80 = sphi 0, %s79
    %s94 = sphi 0, %s80
    %s98 = sphi 0, %s98
    %s100 = sphi 0, %s98
    %s101 = sphi 0, %s100
    %s115 = sphi 0, %s101
    %s123 = sphi 0, %s125
    %s126 = sphi 0, %s123
    %s127 = sphi 0, %s126
    %s143 = sphi 0, %s127
  $region4: #{spec_encoder_forward.5} parent=0 // loop_header_branch
    %13 = sbr.rel (%p11) target = $region8
  $region5: #{spec_encoder_forward.5} parent=0 // loop_body
    %s15 = ssub.s32 %s10, 1
    %s16 = ssub.s32 %s10, 2
    %s23 = sadd.s32 1, %s18
    %p24 = scmp.ge.s32.totalorder %s23, 1
    %s25 = scalar_select %p24, 0, %s23
    %s26 = sadd.s32 1, %s17
    %s27 = scalar_select %p24, %s26, %s17
    %p28 = scmp.ge.s32.totalorder %s27, 2
    %s29 = scalar_select %p28, 0, %s27
    %s31 = sadd.s32 %s30, 1
    %p34 = scmp.eq.s32.totalorder %s10, 1
    %p35 = scmp.ne.s32.totalorder %s30, %s32
    %p36 = scmp.eq.s32.totalorder %s10, 0
    %p37 = por %p35, %p36
    %p38 = scmp.ne.s32.totalorder %s30, %s32
    %p39 = scmp.eq.s32.totalorder %s15, 1
    %p40 = por %p38, %p39
    %p41 = scmp.ne.s32.totalorder %s32, %s33
    %p42 = scmp.eq.s32.totalorder %s15, 0
    %p43 = por %p41, %p42
    %p44 = scmp.ne.s32.totalorder %s32, %s33
    %p45 = scmp.eq.s32.totalorder %s16, 1
    %p46 = por %p44, %p45
    %p48 = scmp.ne.s32.totalorder %s33, %s47
    %p49 = scmp.eq.s32.totalorder %s16, 0
    %p50 = por %p48, %p49
    %s51 = ssub.s32 %s18, %s25
    %p52 = scmp.eq.s32.totalorder %s51, 0
    %s54 = sadd.s32 %s53, 1
    %s55 = scalar_select %p52, %s53, %s54
    %p58 = pneg %p52
    %p59 = scmp.eq.s32.totalorder %s10, 1
    %p60 = por %p58, %p59
    %p61 = scmp.ne.s32.totalorder %s53, %s56
    %p62 = scmp.eq.s32.totalorder %s10, 0
    %p63 = por %p61, %p62
    %p64 = scmp.ne.s32.totalorder %s53, %s56
    %p65 = scmp.eq.s32.totalorder %s15, 1
    %p66 = por %p64, %p65
    %p67 = scmp.ne.s32.totalorder %s56, %s57
    %p68 = scmp.eq.s32.totalorder %s15, 0
    %p69 = por %p67, %p68
    %p70 = scmp.ne.s32.totalorder %s56, %s57
    %p71 = scmp.eq.s32.totalorder %s16, 1
    %p72 = por %p70, %p71
    %p74 = scmp.ne.s32.totalorder %s57, %s73
    %p75 = scmp.eq.s32.totalorder %s16, 0
    %p76 = por %p74, %p75
    %s78 = sadd.s32 %s77, 1
    %p81 = scmp.eq.s32.totalorder %s10, 1
    %p82 = scmp.ne.s32.totalorder %s77, %s79
    %p83 = scmp.eq.s32.totalorder %s10, 0
    %p84 = por %p82, %p83
    %p85 = scmp.ne.s32.totalorder %s77, %s79
    %p86 = scmp.eq.s32.totalorder %s15, 1
    %p87 = por %p85, %p86
    %p88 = scmp.ne.s32.totalorder %s79, %s80
    %p89 = scmp.eq.s32.totalorder %s15, 0
    %p90 = por %p88, %p89
    %p91 = scmp.ne.s32.totalorder %s79, %s80
    %p92 = scmp.eq.s32.totalorder %s16, 1
    %p93 = por %p91, %p92
    %p95 = scmp.ne.s32.totalorder %s80, %s94
    %p96 = scmp.eq.s32.totalorder %s16, 0
    %p97 = por %p95, %p96
    %s99 = sadd.s32 %s98, 1
    %p102 = scmp.eq.s32.totalorder %s10, 1
    %p103 = scmp.ne.s32.totalorder %s98, %s100
    %p104 = scmp.eq.s32.totalorder %s10, 0
    %p105 = por %p103, %p104
    %p106 = scmp.ne.s32.totalorder %s98, %s100
    %p107 = scmp.eq.s32.totalorder %s15, 1
    %p108 = por %p106, %p107
    %p109 = scmp.ne.s32.totalorder %s100, %s101
    %p110 = scmp.eq.s32.totalorder %s15, 0
    %p111 = por %p109, %p110
    %p112 = scmp.ne.s32.totalorder %s100, %s101
    %p113 = scmp.eq.s32.totalorder %s16, 1
    %p114 = por %p112, %p113
    %p116 = scmp.ne.s32.totalorder %s101, %s115
    %p117 = scmp.eq.s32.totalorder %s16, 0
    %p118 = por %p116, %p117
    %s119 = smul.u32 %s18, %s17
    %s120 = smul.u32 %s25, %s29
    %s121 = ssub.s32 %s119, %s120
    %p122 = scmp.eq.s32.totalorder %s121, 0
    %s124 = sadd.s32 %s123, 1
    %s125 = scalar_select %p122, %s123, %s124
    %p128 = pneg %p122
    %p129 = scmp.eq.s32.totalorder %s10, 1
    %p130 = por %p128, %p129
    %p131 = scmp.ne.s32.totalorder %s123, %s126
    %p132 = scmp.eq.s32.totalorder %s10, 0
    %p133 = por %p131, %p132
    %p134 = scmp.ne.s32.totalorder %s123, %s126
    %p135 = scmp.eq.s32.totalorder %s15, 1
    %p136 = por %p134, %p135
    %p137 = scmp.ne.s32.totalorder %s126, %s127
    %p138 = scmp.eq.s32.totalorder %s15, 0
    %p139 = por %p137, %p138
    %p140 = scmp.ne.s32.totalorder %s126, %s127
    %p141 = scmp.eq.s32.totalorder %s16, 1
    %p142 = por %p140, %p141
    %p144 = scmp.ne.s32.totalorder %s127, %s143
    %p145 = scmp.eq.s32.totalorder %s16, 0
    %p146 = por %p144, %p145
    %p147 = scmp.le.s32.totalorder 1, %s10
    %p148 = scmp.lt.s32.totalorder %s10, 3
    %p149 = pnand %p147, %p148
    %p150 = pneg %p149
    // Predicated region
    $region9: #{spec_encoder_forward.5} parent=5 // pred_check
      _
    $region10: #{spec_encoder_forward.5} parent=5 // pred_check_branch
      %152 = sbr.rel (%p149) target = $region12
    $region11: #{spec_encoder_forward.5} parent=5 // pred_region
      %s153 = ssub.s32 %s10, 1
      // Predicated region
      $region13: #{spec_encoder_forward.5} parent=11 // pred_check
        %p154 = pneg %p43
      $region14: #{spec_encoder_forward.5} parent=11 // pred_check_branch
        %156 = sbr.rel (%p154) target = $region16
      $region15: #{spec_encoder_forward.5} parent=11 // pred_region
        _
      $region16: #{spec_encoder_forward.5} parent=11 // pred_fallthru
        _
      // Predicated region
      $region17: #{spec_encoder_forward.5} parent=11 // pred_check
        %p157 = pneg %p69
      $region18: #{spec_encoder_forward.5} parent=11 // pred_check_branch
        %159 = sbr.rel (%p157) target = $region20
      $region19: #{spec_encoder_forward.5} parent=11 // pred_region
        %p160 = scmp.lt.s32.totalorder %s20, 0
        %s161 = scalar_select %p160, %s20, 0
        %s162 = smul.addr %s161, 4
        %s163 = scalar_lea.vmem %s1, %s162
      $region20: #{spec_encoder_forward.5} parent=11 // pred_fallthru
        _
      // Predicated region
      $region21: #{spec_encoder_forward.5} parent=11 // pred_check
        %p164 = pneg %p90
      $region22: #{spec_encoder_forward.5} parent=11 // pred_check_branch
        %166 = sbr.rel (%p164) target = $region24
      $region23: #{spec_encoder_forward.5} parent=11 // pred_region
        _
      $region24: #{spec_encoder_forward.5} parent=11 // pred_fallthru
        _
      // Predicated region
      $region25: #{spec_encoder_forward.5} parent=11 // pred_check
        %p167 = pneg %p111
      $region26: #{spec_encoder_forward.5} parent=11 // pred_check_branch
        %169 = sbr.rel (%p167) target = $region28
      $region27: #{spec_encoder_forward.5} parent=11 // pred_region
        _
      $region28: #{spec_encoder_forward.5} parent=11 // pred_fallthru
        _
    $region12: #{spec_encoder_forward.5} parent=5 // pred_fallthru
      _
    %p170 = scmp.lt.s32.totalorder %s10, 2
    // Predicated region
    $region29: #{spec_encoder_forward.5} parent=5 // pred_check
      %p171 = pneg %p170
    $region30: #{spec_encoder_forward.5} parent=5 // pred_check_branch
      %173 = sbr.rel (%p171) target = $region32
    $region31: #{spec_encoder_forward.5} parent=5 // pred_region
      _
    $region32: #{spec_encoder_forward.5} parent=5 // pred_fallthru
      _
    %p174 = scmp.le.s32.totalorder 1, %s10
    %p175 = scmp.lt.s32.totalorder %s10, 3
    %p176 = pnand %p174, %p175
    %p177 = pneg %p176
    // Predicated region
    $region33: #{spec_encoder_forward.5} parent=5 // pred_check
      _
    $region34: #{spec_encoder_forward.5} parent=5 // pred_check_branch
      %179 = sbr.rel (%p176) target = $region36
    $region35: #{spec_encoder_forward.5} parent=5 // pred_region
      %s180 = ssub.s32 %s10, 1
      %p181 = pneg %p43
      %p182 = pneg %p40
      %p183 = scmp.lt.s32.totalorder %s20, 0
      %s184 = scalar_select %p183, %s20, 0
      %s185 = smul.addr %s184, 4
      %s186 = scalar_lea.vmem %s1, %s185
      %p187 = pneg %p69
      %p188 = pneg %p66
      %p189 = pneg %p90
      %p190 = pneg %p87
      %p191 = pneg %p111
      %p192 = pneg %p108
      %p193 = pneg %p139
      %p194 = pneg %p136
      %s195 = smul.u32 %s20, %s19
      %p196 = scmp.lt.s32.totalorder %s195, 0
      %s197 = scalar_select %p196, %s195, 0
      %s198 = smul.addr %s197, 8
      %s199 = scalar_lea.vmem %s4, %s198
      %p200 = scmp.lt.s32.totalorder %s20, 0
      %s201 = scalar_select %p200, %s20, 0
      %s202 = smul.addr %s201, 4
      %s203 = scalar_lea.vmem %s1, %s202
      %s204 = smul.u32 %s20, %s19
      %p205 = scmp.lt.s32.totalorder %s204, 0
      %s206 = scalar_select %p205, %s204, 0
      %s207 = smul.addr %s206, 8
      %s208 = scalar_lea.vmem %s4, %s207
      %s209 = smul.u32 %s20, %s19
      %v211 = vld [vmem:[%s0] sm:$0xff]
      %v212 = vld [vmem:[%s0 + $0x8] sm:$0xf]
      %v213 = vld [vmem:[%s0 + $0xc] sm:$0xff]
      %v214 = vld [vmem:[%s0 + $0x14] sm:$0xf]
      %v215 = vld [vmem:[%s0 + $0x18] sm:$0xff]
      %v216 = vld [vmem:[%s0 + $0x20] sm:$0xf]
      %v217 = vld [vmem:[%s0 + $0x24] sm:$0xff]
      %v218 = vld [vmem:[%s0 + $0x2c] sm:$0xf]
      %v219 = vld [vmem:[%s0 + $0x30] sm:$0xff]
      %v220 = vld [vmem:[%s0 + $0x38] sm:$0xf]
      %v221 = vld [vmem:[%s0 + $0x3c] sm:$0xff]
      %v222 = vld [vmem:[%s0 + $0x44] sm:$0xf]
      %v223 = vld [vmem:[%s0 + $0x48] sm:$0xff]
      %v224 = vld [vmem:[%s0 + $0x50] sm:$0xf]
      %v225 = vld [vmem:[%s0 + $0x54] sm:$0xff]
      %v226 = vld [vmem:[%s0 + $0x5c] sm:$0xf]
      %v227 = vld [vmem:[%s203] sm:$0xf]
      %v228 = vld [vmem:[%s203 + $0x4] sm:$0xf]
      %v229 = vld [vmem:[%s203 + $0x8] sm:$0xf]
      %v230 = vld [vmem:[%s203 + $0xc] sm:$0xf]
      %v231 = vld [vmem:[%s203 + $0x10] sm:$0xf]
      %v232 = vld [vmem:[%s203 + $0x14] sm:$0xf]
      %v233 = vld [vmem:[%s203 + $0x18] sm:$0xf]
      %v234 = vld [vmem:[%s203 + $0x1c] sm:$0xf]
      %v235 = vld [vmem:[%s203 + $0x20] sm:$0xf]
      %v236 = vld [vmem:[%s203 + $0x24] sm:$0xf]
      %v237 = vld [vmem:[%s203 + $0x28] sm:$0xf]
      %v238 = vld [vmem:[%s203 + $0x2c] sm:$0xf]
      %v239 = vld [vmem:[%s203 + $0x30] sm:$0xf]
      %v240 = vld [vmem:[%s203 + $0x34] sm:$0xf]
      %v241 = vld [vmem:[%s203 + $0x38] sm:$0xf]
      %v242 = vld [vmem:[%s203 + $0x3c] sm:$0xf]
      %v243 = vld [vmem:[%s203 + $0x40] sm:$0xf]
      %v244 = vld [vmem:[%s203 + $0x44] sm:$0xf]
      %v245 = vld [vmem:[%s203 + $0x48] sm:$0xf]
      %v246 = vld [vmem:[%s203 + $0x4c] sm:$0xf]
      %v247 = vld [vmem:[%s203 + $0x50] sm:$0xf]
      %v248 = vld [vmem:[%s203 + $0x54] sm:$0xf]
      %v249 = vld [vmem:[%s203 + $0x58] sm:$0xf]
      %v250 = vld [vmem:[%s203 + $0x5c] sm:$0xf]
      %v251 = vld [vmem:[%s203 + $0x60] sm:$0xf]
      %v252 = vld [vmem:[%s203 + $0x64] sm:$0xf]
      %v253 = vld [vmem:[%s203 + $0x68] sm:$0xf]
      %v254 = vld [vmem:[%s203 + $0x6c] sm:$0xf]
      %v255 = vld [vmem:[%s203 + $0x70] sm:$0xf]
      %v256 = vld [vmem:[%s203 + $0x74] sm:$0xf]
      %v257 = vld [vmem:[%s203 + $0x78] sm:$0xf]
      %v258 = vld [vmem:[%s203 + $0x7c] sm:$0xf]
      %v259 = vld [vmem:[%s203 + $0x80] sm:$0xf]
      %v260 = vld [vmem:[%s203 + $0x84] sm:$0xf]
      %v261 = vld [vmem:[%s203 + $0x88] sm:$0xf]
      %v262 = vld [vmem:[%s203 + $0x8c] sm:$0xf]
      %v279 = vunpack.c.l.b16 %v211
      %v280 = vunpack.c.h.b16 %v211
      %v281 = vunpack.c.l.b16 %v212
      %v282 = vunpack.c.l.b16 %v213
      %v283 = vunpack.c.h.b16 %v213
      %v284 = vunpack.c.l.b16 %v214
      %v285 = vunpack.c.l.b16 %v215
      %v286 = vunpack.c.h.b16 %v215
      %v287 = vunpack.c.l.b16 %v216
      %v288 = vunpack.c.l.b16 %v217
      %v289 = vunpack.c.h.b16 %v217
      %v290 = vunpack.c.l.b16 %v218
      %v291 = vunpack.c.l.b16 %v219
      %v292 = vunpack.c.h.b16 %v219
      %v293 = vunpack.c.l.b16 %v220
      %v294 = vunpack.c.l.b16 %v221
      %v295 = vunpack.c.h.b16 %v221
      %v296 = vunpack.c.l.b16 %v222
      %v297 = vunpack.c.l.b16 %v223
      %v298 = vunpack.c.h.b16 %v223
      %v299 = vunpack.c.l.b16 %v224
      %v300 = vunpack.c.l.b16 %v225
      %v301 = vunpack.c.h.b16 %v225
      %v302 = vunpack.c.l.b16 %v226
      %v303 = vpack.c.b16 %v282, %v279
      %v304 = vpack.c.b16 %v283, %v280
      %v305 = vpack.c.b16 %v284, %v281
      %v306 = vpack.c.b16 %v288, %v285
      %v307 = vpack.c.b16 %v289, %v286
      %v308 = vpack.c.b16 %v290, %v287
      %v309 = vpack.c.b16 %v294, %v291
      %v310 = vpack.c.b16 %v295, %v292
      %v311 = vpack.c.b16 %v296, %v293
      %v312 = vpack.c.b16 %v300, %v297
      %v313 = vpack.c.b16 %v301, %v298
      %v314 = vpack.c.b16 %v302, %v299
      %v359 = vunpack.c.l.b16 %v227
      %v360 = vunpack.c.l.b16 %v228
      %v361 = vunpack.c.l.b16 %v229
      %v362 = vunpack.c.l.b16 %v230
      %v363 = vunpack.c.l.b16 %v231
      %v364 = vunpack.c.l.b16 %v232
      %v365 = vunpack.c.l.b16 %v233
      %v366 = vunpack.c.l.b16 %v234
      %v367 = vunpack.c.l.b16 %v235
      %v368 = vunpack.c.l.b16 %v236
      %v369 = vunpack.c.l.b16 %v237
      %v370 = vunpack.c.l.b16 %v238
      %v371 = vunpack.c.l.b16 %v239
      %v372 = vunpack.c.l.b16 %v240
      %v373 = vunpack.c.l.b16 %v241
      %v374 = vunpack.c.l.b16 %v242
      %v375 = vunpack.c.l.b16 %v243
      %v376 = vunpack.c.l.b16 %v244
      %v377 = vunpack.c.l.b16 %v245
      %v378 = vunpack.c.l.b16 %v246
      %v379 = vunpack.c.l.b16 %v247
      %v380 = vunpack.c.l.b16 %v248
      %v381 = vunpack.c.l.b16 %v249
      %v382 = vunpack.c.l.b16 %v250
      %v383 = vunpack.c.l.b16 %v251
      %v384 = vunpack.c.l.b16 %v252
      %v385 = vunpack.c.l.b16 %v253
      %v386 = vunpack.c.l.b16 %v254
      %v387 = vunpack.c.l.b16 %v255
      %v388 = vunpack.c.l.b16 %v256
      %v389 = vunpack.c.l.b16 %v257
      %v390 = vunpack.c.l.b16 %v258
      %v391 = vunpack.c.l.b16 %v259
      %v392 = vunpack.c.l.b16 %v260
      %v393 = vunpack.c.l.b16 %v261
      %v394 = vunpack.c.l.b16 %v262
      %v395 = vpack.c.b16 %v360, %v359
      %v396 = vpack.c.b16 %v362, %v361
      %v397 = vpack.c.b16 %v364, %v363
      %v398 = vpack.c.b16 %v366, %v365
      %v399 = vpack.c.b16 %v368, %v367
      %v400 = vpack.c.b16 %v370, %v369
      %v401 = vpack.c.b16 %v372, %v371
      %v402 = vpack.c.b16 %v374, %v373
      %v403 = vpack.c.b16 %v376, %v375
      %v404 = vpack.c.b16 %v378, %v377
      %v405 = vpack.c.b16 %v380, %v379
      %v406 = vpack.c.b16 %v382, %v381
      %v407 = vpack.c.b16 %v384, %v383
      %v408 = vpack.c.b16 %v386, %v385
      %v409 = vpack.c.b16 %v388, %v387
      %v410 = vpack.c.b16 %v390, %v389
      %v411 = vpack.c.b16 %v392, %v391
      %v412 = vpack.c.b16 %v394, %v393
      %vm431 = vcmask 261120
      %v433 = vsel %vm431, %v305, 0
      %v436 = vsel %vm431, %v308, 0
      %v439 = vsel %vm431, %v311, 0
      %v442 = vsel %vm431, %v314, 0
      %444 = vmatprep.subr.bf16.mxu0 0
      %445 = vmatpush1.bf16.msra.mxu0 %v402
      %446 = vmatprep.subr.bf16.mxu0 0
      %447 = vmatpush1.bf16.msra.mxu0 %v401
      %448 = vmatprep.subr.bf16.mxu0 0
      %449 = vmatpush1.bf16.msra.mxu0 %v400
      %450 = vmatprep.subr.bf16.mxu0 0
      %451 = vmatpush1.bf16.msra.mxu0 %v399
      %452 = vmatprep.subr.bf16.mxu0 0
      %453 = vmatpush1.bf16.msra.mxu0 %v398
      %454 = vmatprep.subr.bf16.mxu0 0
      %455 = vmatpush1.bf16.msra.mxu0 %v397
      %456 = vmatprep.subr.bf16.mxu0 0
      %457 = vmatpush1.bf16.msra.mxu0 %v396
      %458 = vmatprep.subr.bf16.mxu0 0
      %459 = vmatpush1.bf16.msra.mxu0 %v395
      %460 = vmatprep.subr.bf16.mxu0 0
      %461 = vmatpush2.bf16.msra.mxu0 %v410
      %462 = vmatprep.subr.bf16.mxu0 0
      %463 = vmatpush2.bf16.msra.mxu0 %v409
      %464 = vmatprep.subr.bf16.mxu0 0
      %465 = vmatpush2.bf16.msra.mxu0 %v408
      %466 = vmatprep.subr.bf16.mxu0 0
      %467 = vmatpush2.bf16.msra.mxu0 %v407
      %468 = vmatprep.subr.bf16.mxu0 0
      %469 = vmatpush2.bf16.msra.mxu0 %v406
      %470 = vmatprep.subr.bf16.mxu0 0
      %471 = vmatpush2.bf16.msra.mxu0 %v405
      %472 = vmatprep.subr.bf16.mxu0 0
      %473 = vmatpush2.bf16.msra.mxu0 %v404
      %474 = vmatprep.subr.bf16.mxu0 0
      %475 = vmatpush2.bf16.msra.mxu0 %v403
      %476 = vmatprep.mubr.bf16.mxu0 %v304
      %477 = vmatmul.mubr.bf16.gmra.mxu0 %v303
      %v478 = vpop.f32.mrf.mxu0
      %v479 = vadd.f32 0.0, %v478
      %v480 = vpop.f32.mrf.mxu0
      %v481 = vpop.f32.mrf.mxu0
      %v482 = vadd.f32 0.0, %v481
      %v483 = vpop.f32.mrf.mxu0
      %484 = vmatprep.mubr.bf16.mxu0 %v307
      %485 = vmatmul.mubr.bf16.gmra.mxu0 %v306
      %v486 = vpop.f32.mrf.mxu0
      %v487 = vadd.f32 0.0, %v486
      %v488 = vpop.f32.mrf.mxu0
      %v489 = vpop.f32.mrf.mxu0
      %v490 = vadd.f32 0.0, %v489
      %v491 = vpop.f32.mrf.mxu0
      %492 = vmatprep.mubr.bf16.mxu0 %v310
      %493 = vmatmul.mubr.bf16.gmra.mxu0 %v309
      %v494 = vpop.f32.mrf.mxu0
      %v495 = vadd.f32 0.0, %v494
      %v496 = vpop.f32.mrf.mxu0
      %v497 = vpop.f32.mrf.mxu0
      %v498 = vadd.f32 0.0, %v497
      %v499 = vpop.f32.mrf.mxu0
      %500 = vmatprep.mubr.bf16.mxu0 %v313
      %501 = vmatmul.mubr.bf16.gmra.mxu0 %v312
      %v502 = vpop.f32.mrf.mxu0
      %v503 = vadd.f32 0.0, %v502
      %v504 = vpop.f32.mrf.mxu0
      %v505 = vpop.f32.mrf.mxu0
      %v506 = vadd.f32 0.0, %v505
      %v507 = vpop.f32.mrf.mxu0
      %508 = vdwg.mxu0
      %509 = vmatprep.subr.bf16.mxu0 0
      %510 = vmatpush1.bf16.msra.mxu0 0
      %511 = vmatprep.subr.bf16.mxu0 0
      %512 = vmatpush1.bf16.msra.mxu0 0
      %513 = vmatprep.subr.bf16.mxu0 0
      %514 = vmatpush1.bf16.msra.mxu0 0
      %515 = vmatprep.subr.bf16.mxu0 0
      %516 = vmatpush1.bf16.msra.mxu0 0
      %517 = vmatprep.subr.bf16.mxu0 0
      %518 = vmatpush1.bf16.msra.mxu0 0
      %519 = vmatprep.subr.bf16.mxu0 0
      %520 = vmatpush1.bf16.msra.mxu0 0
      %521 = vmatprep.subr.bf16.mxu0 0
      %522 = vmatpush1.bf16.msra.mxu0 %v412
      %523 = vmatprep.subr.bf16.mxu0 0
      %524 = vmatpush1.bf16.msra.mxu0 %v411
      %525 = vmatprep.subr.bf16.mxu0 0
      %526 = vmatpush2.bf16.msra.mxu0 0
      %527 = vmatprep.subr.bf16.mxu0 0
      %528 = vmatpush2.bf16.msra.mxu0 0
      %529 = vmatprep.subr.bf16.mxu0 0
      %530 = vmatpush2.bf16.msra.mxu0 0
      %531 = vmatprep.subr.bf16.mxu0 0
      %532 = vmatpush2.bf16.msra.mxu0 0
      %533 = vmatprep.subr.bf16.mxu0 0
      %534 = vmatpush2.bf16.msra.mxu0 0
      %535 = vmatprep.subr.bf16.mxu0 0
      %536 = vmatpush2.bf16.msra.mxu0 0
      %537 = vmatprep.subr.bf16.mxu0 0
      %538 = vmatpush2.bf16.msra.mxu0 0
      %539 = vmatprep.subr.bf16.mxu0 0
      %540 = vmatpush2.bf16.msra.mxu0 0
      %541 = vmatprep.mubr.bf16.mxu0 0
      %542 = vmatmul.mubr.bf16.gmra.mxu0 %v433
      %v543 = vpop.f32.mrf.mxu0
      %v544 = vadd.f32 %v479, %v543
      %v545 = vpop.f32.mrf.mxu0
      %v546 = vpop.f32.mrf.mxu0
      %v547 = vadd.f32 %v482, %v546
      %v548 = vpop.f32.mrf.mxu0
      %549 = vmatprep.mubr.bf16.mxu0 0
      %550 = vmatmul.mubr.bf16.gmra.mxu0 %v436
      %v551 = vpop.f32.mrf.mxu0
      %v552 = vadd.f32 %v487, %v551
      %v553 = vpop.f32.mrf.mxu0
      %v554 = vpop.f32.mrf.mxu0
      %v555 = vadd.f32 %v490, %v554
      %v556 = vpop.f32.mrf.mxu0
      %557 = vmatprep.mubr.bf16.mxu0 0
      %558 = vmatmul.mubr.bf16.gmra.mxu0 %v439
      %v559 = vpop.f32.mrf.mxu0
      %v560 = vadd.f32 %v495, %v559
      %v561 = vpop.f32.mrf.mxu0
      %v562 = vpop.f32.mrf.mxu0
      %v563 = vadd.f32 %v498, %v562
      %v564 = vpop.f32.mrf.mxu0
      %565 = vmatprep.mubr.bf16.mxu0 0
      %566 = vmatmul.mubr.bf16.gmra.mxu0 %v442
      %v567 = vpop.f32.mrf.mxu0
      %v568 = vadd.f32 %v503, %v567
      %v569 = vpop.f32.mrf.mxu0
      %v570 = vpop.f32.mrf.mxu0
      %v571 = vadd.f32 %v506, %v570
      %v572 = vpop.f32.mrf.mxu0
      %573 = vdwg.mxu0
      %p574 = scmp.eq.s32.totalorder %s19, 0
      // Predicated region
      $region37: #{spec_encoder_forward.5} parent=35 // pred_check
        %p575 = pneg %p574
      $region38: #{spec_encoder_forward.5} parent=35 // pred_check_branch
        %577 = sbr.rel (%p575) target = $region40
      $region39: #{spec_encoder_forward.5} parent=35 // pred_region
        %p578 = scmp.eq.s32.totalorder %s20, 0
        // Predicated region
        $region41: #{spec_encoder_forward.5} parent=39 // pred_check
          %p579 = pneg %p578
        $region42: #{spec_encoder_forward.5} parent=39 // pred_check_branch
          %581 = sbr.rel (%p579) target = $region44
        $region43: #{spec_encoder_forward.5} parent=39 // pred_region
          %vm582 = vcmask 7168
          %583 = vst.msk [vmem:[#allocation2] sm:$0xff] %vm582, 0.0
          %584 = vst.msk [vmem:[#allocation2 + $0x8] sm:$0xff] %vm582, 0.0
          %585 = vst.msk [vmem:[#allocation2 + $0x10] sm:$0xff] %vm582, 0.0
          %586 = vst.msk [vmem:[#allocation2 + $0x18] sm:$0xff] %vm582, 0.0
          %587 = vst.msk [vmem:[#allocation2 + $0x20] sm:$0xff] %vm582, 0.0
          %588 = vst.msk [vmem:[#allocation2 + $0x28] sm:$0xff] %vm582, 0.0
          %589 = vst.msk [vmem:[#allocation2 + $0x30] sm:$0xff] %vm582, 0.0
          %590 = vst.msk [vmem:[#allocation2 + $0x38] sm:$0xff] %vm582, 0.0
          %591 = vst.msk [vmem:[#allocation3] sm:$0xff] %vm582, 0.0
          %592 = vst.msk [vmem:[#allocation3 + $0x8] sm:$0xff] %vm582, 0.0
          %593 = vst.msk [vmem:[#allocation3 + $0x10] sm:$0xff] %vm582, 0.0
          %594 = vst.msk [vmem:[#allocation3 + $0x18] sm:$0xff] %vm582, 0.0
          %595 = vst.msk [vmem:[#allocation3 + $0x20] sm:$0xff] %vm582, 0.0
          %596 = vst.msk [vmem:[#allocation3 + $0x28] sm:$0xff] %vm582, 0.0
          %597 = vst.msk [vmem:[#allocation3 + $0x30] sm:$0xff] %vm582, 0.0
          %598 = vst.msk [vmem:[#allocation3 + $0x38] sm:$0xff] %vm582, 0.0
        $region44: #{spec_encoder_forward.5} parent=39 // pred_fallthru
          _
        %v599 = vld [vmem:[#allocation2] sm:$0xff]
        %v600 = vld [vmem:[#allocation2 + $0x8] sm:$0xff]
        %v601 = vld [vmem:[#allocation2 + $0x10] sm:$0xff]
        %v602 = vld [vmem:[#allocation2 + $0x18] sm:$0xff]
        %v603 = vld [vmem:[#allocation2 + $0x20] sm:$0xff]
        %v604 = vld [vmem:[#allocation2 + $0x28] sm:$0xff]
        %v605 = vld [vmem:[#allocation2 + $0x30] sm:$0xff]
        %v606 = vld [vmem:[#allocation2 + $0x38] sm:$0xff]
        %vm607 = vcmask 64512
        %v608 = vsel %vm607, %v544, 0.0
        %609 = vadd.xlane.f32.xlu0 %v608
        %v610 = vpop.xlane.xlu0 %609
        %v611 = vsel %vm607, %v547, 0.0
        %612 = vadd.xlane.f32.xlu0 %v611
        %v613 = vpop.xlane.xlu0 %612
        %v614 = vsel %vm607, %v552, 0.0
        %615 = vadd.xlane.f32.xlu0 %v614
        %v616 = vpop.xlane.xlu0 %615
        %v617 = vsel %vm607, %v555, 0.0
        %618 = vadd.xlane.f32.xlu0 %v617
        %v619 = vpop.xlane.xlu0 %618
        %v620 = vsel %vm607, %v560, 0.0
        %621 = vadd.xlane.f32.xlu0 %v620
        %v622 = vpop.xlane.xlu0 %621
        %v623 = vsel %vm607, %v563, 0.0
        %624 = vadd.xlane.f32.xlu0 %v623
        %v625 = vpop.xlane.xlu0 %624
        %v626 = vsel %vm607, %v568, 0.0
        %627 = vadd.xlane.f32.xlu0 %v626
        %v628 = vpop.xlane.xlu0 %627
        %v629 = vsel %vm607, %v571, 0.0
        %630 = vadd.xlane.f32.xlu0 %v629
        %v631 = vpop.xlane.xlu0 %630
        %v632 = vadd.f32 %v599, %v610
        %v633 = vadd.f32 %v600, %v613
        %v634 = vadd.f32 %v601, %v616
        %v635 = vadd.f32 %v602, %v619
        %v636 = vadd.f32 %v603, %v622
        %v637 = vadd.f32 %v604, %v625
        %v638 = vadd.f32 %v605, %v628
        %v639 = vadd.f32 %v606, %v631
        %vm640 = vcmask 7168
        %641 = vst.msk [vmem:[#allocation2] sm:$0xff] %vm640, %v632
        %642 = vst.msk [vmem:[#allocation2 + $0x8] sm:$0xff] %vm640, %v633
        %643 = vst.msk [vmem:[#allocation2 + $0x10] sm:$0xff] %vm640, %v634
        %644 = vst.msk [vmem:[#allocation2 + $0x18] sm:$0xff] %vm640, %v635
        %645 = vst.msk [vmem:[#allocation2 + $0x20] sm:$0xff] %vm640, %v636
        %646 = vst.msk [vmem:[#allocation2 + $0x28] sm:$0xff] %vm640, %v637
        %647 = vst.msk [vmem:[#allocation2 + $0x30] sm:$0xff] %vm640, %v638
        %648 = vst.msk [vmem:[#allocation2 + $0x38] sm:$0xff] %vm640, %v639
        %v649 = vld [vmem:[#allocation3] sm:$0xff]
        %v650 = vld [vmem:[#allocation3 + $0x8] sm:$0xff]
        %v651 = vld [vmem:[#allocation3 + $0x10] sm:$0xff]
        %v652 = vld [vmem:[#allocation3 + $0x18] sm:$0xff]
        %v653 = vld [vmem:[#allocation3 + $0x20] sm:$0xff]
        %v654 = vld [vmem:[#allocation3 + $0x28] sm:$0xff]
        %v655 = vld [vmem:[#allocation3 + $0x30] sm:$0xff]
        %v656 = vld [vmem:[#allocation3 + $0x38] sm:$0xff]
        %v657 = vmul.f32 %v544, %v544
        %v658 = vmul.f32 %v547, %v547
        %v659 = vmul.f32 %v552, %v552
        %v660 = vmul.f32 %v555, %v555
        %v661 = vmul.f32 %v560, %v560
        %v662 = vmul.f32 %v563, %v563
        %v663 = vmul.f32 %v568, %v568
        %v664 = vmul.f32 %v571, %v571
        %v665 = vsel %vm607, %v657, 0.0
        %666 = vadd.xlane.f32.xlu0 %v665
        %v667 = vpop.xlane.xlu0 %666
        %v668 = vsel %vm607, %v658, 0.0
        %669 = vadd.xlane.f32.xlu0 %v668
        %v670 = vpop.xlane.xlu0 %669
        %v671 = vsel %vm607, %v659, 0.0
        %672 = vadd.xlane.f32.xlu0 %v671
        %v673 = vpop.xlane.xlu0 %672
        %v674 = vsel %vm607, %v660, 0.0
        %675 = vadd.xlane.f32.xlu0 %v674
        %v676 = vpop.xlane.xlu0 %675
        %v677 = vsel %vm607, %v661, 0.0
        %678 = vadd.xlane.f32.xlu0 %v677
        %v679 = vpop.xlane.xlu0 %678
        %v680 = vsel %vm607, %v662, 0.0
        %681 = vadd.xlane.f32.xlu0 %v680
        %v682 = vpop.xlane.xlu0 %681
        %v683 = vsel %vm607, %v663, 0.0
        %684 = vadd.xlane.f32.xlu0 %v683
        %v685 = vpop.xlane.xlu0 %684
        %v686 = vsel %vm607, %v664, 0.0
        %687 = vadd.xlane.f32.xlu0 %v686
        %v688 = vpop.xlane.xlu0 %687
        %v689 = vadd.f32 %v649, %v667
        %v690 = vadd.f32 %v650, %v670
        %v691 = vadd.f32 %v651, %v673
        %v692 = vadd.f32 %v652, %v676
        %v693 = vadd.f32 %v653, %v679
        %v694 = vadd.f32 %v654, %v682
        %v695 = vadd.f32 %v655, %v685
        %v696 = vadd.f32 %v656, %v688
        %697 = vst.msk [vmem:[#allocation3] sm:$0xff] %vm640, %v689
        %698 = vst.msk [vmem:[#allocation3 + $0x8] sm:$0xff] %vm640, %v690
        %699 = vst.msk [vmem:[#allocation3 + $0x10] sm:$0xff] %vm640, %v691
        %700 = vst.msk [vmem:[#allocation3 + $0x18] sm:$0xff] %vm640, %v692
        %701 = vst.msk [vmem:[#allocation3 + $0x20] sm:$0xff] %vm640, %v693
        %702 = vst.msk [vmem:[#allocation3 + $0x28] sm:$0xff] %vm640, %v694
        %703 = vst.msk [vmem:[#allocation3 + $0x30] sm:$0xff] %vm640, %v695
        %704 = vst.msk [vmem:[#allocation3 + $0x38] sm:$0xff] %vm640, %v696
        // Predicated region
        $region45: #{spec_encoder_forward.5} parent=39 // pred_check
          %p705 = pneg %p578
        $region46: #{spec_encoder_forward.5} parent=39 // pred_check_branch
          %707 = sbr.rel (%p705) target = $region48
        $region47: #{spec_encoder_forward.5} parent=39 // pred_region
          %v708 = vld [vmem:[#allocation2] sm:$0xff]
          %v709 = vld [vmem:[#allocation2 + $0x8] sm:$0xff]
          %v710 = vld [vmem:[#allocation2 + $0x10] sm:$0xff]
          %v711 = vld [vmem:[#allocation2 + $0x18] sm:$0xff]
          %v712 = vld [vmem:[#allocation2 + $0x20] sm:$0xff]
          %v713 = vld [vmem:[#allocation2 + $0x28] sm:$0xff]
          %v714 = vld [vmem:[#allocation2 + $0x30] sm:$0xff]
          %v715 = vld [vmem:[#allocation2 + $0x38] sm:$0xff]
          %v716 = vmul.f32 %v708, 0.125
          %v717 = vmul.f32 %v709, 0.125
          %v718 = vmul.f32 %v710, 0.125
          %v719 = vmul.f32 %v711, 0.125
          %v720 = vmul.f32 %v712, 0.125
          %v721 = vmul.f32 %v713, 0.125
          %v722 = vmul.f32 %v714, 0.125
          %v723 = vmul.f32 %v715, 0.125
          %v724 = vld [vmem:[#allocation3] sm:$0xff]
          %v725 = vld [vmem:[#allocation3 + $0x8] sm:$0xff]
          %v726 = vld [vmem:[#allocation3 + $0x10] sm:$0xff]
          %v727 = vld [vmem:[#allocation3 + $0x18] sm:$0xff]
          %v728 = vld [vmem:[#allocation3 + $0x20] sm:$0xff]
          %v729 = vld [vmem:[#allocation3 + $0x28] sm:$0xff]
          %v730 = vld [vmem:[#allocation3 + $0x30] sm:$0xff]
          %v731 = vld [vmem:[#allocation3 + $0x38] sm:$0xff]
          %v732 = vmul.f32 %v724, 0.125
          %v733 = vmul.f32 %v725, 0.125
          %v734 = vmul.f32 %v726, 0.125
          %v735 = vmul.f32 %v727, 0.125
          %v736 = vmul.f32 %v728, 0.125
          %v737 = vmul.f32 %v729, 0.125
          %v738 = vmul.f32 %v730, 0.125
          %v739 = vmul.f32 %v731, 0.125
          %v740 = vmul.f32 %v716, %v716
          %v741 = vmul.f32 %v717, %v717
          %v742 = vmul.f32 %v718, %v718
          %v743 = vmul.f32 %v719, %v719
          %v744 = vmul.f32 %v720, %v720
          %v745 = vmul.f32 %v721, %v721
          %v746 = vmul.f32 %v722, %v722
          %v747 = vmul.f32 %v723, %v723
          %v748 = vsub.f32 %v732, %v740
          %v749 = vsub.f32 %v733, %v741
          %v750 = vsub.f32 %v734, %v742
          %v751 = vsub.f32 %v735, %v743
          %v752 = vsub.f32 %v736, %v744
          %v753 = vsub.f32 %v737, %v745
          %v754 = vsub.f32 %v738, %v746
          %v755 = vsub.f32 %v739, %v747
          %v756 = vmax.f32 %v748, 0.0
          %v757 = vmax.f32 %v749, 0.0
          %v758 = vmax.f32 %v750, 0.0
          %v759 = vmax.f32 %v751, 0.0
          %v760 = vmax.f32 %v752, 0.0
          %v761 = vmax.f32 %v753, 0.0
          %v762 = vmax.f32 %v754, 0.0
          %v763 = vmax.f32 %v755, 0.0
          %v764 = vld [vmem:[%s2] sm:$0xff]
          %v765 = vld [vmem:[%s2 + $0x8] sm:$0xff]
          %v766 = vld [vmem:[%s2 + $0x10] sm:$0xff]
          %v767 = vld [vmem:[%s2 + $0x18] sm:$0xff]
          %v768 = vld [vmem:[%s2 + $0x20] sm:$0xff]
          %v769 = vld [vmem:[%s2 + $0x28] sm:$0xff]
          %v770 = vld [vmem:[%s2 + $0x30] sm:$0xff]
          %v771 = vld [vmem:[%s2 + $0x38] sm:$0xff]
          %v772 = vadd.f32 %v756, 1e-05
          %v773 = vadd.f32 %v757, 1e-05
          %v774 = vadd.f32 %v758, 1e-05
          %v775 = vadd.f32 %v759, 1e-05
          %v776 = vadd.f32 %v760, 1e-05
          %v777 = vadd.f32 %v761, 1e-05
          %v778 = vadd.f32 %v762, 1e-05
          %v779 = vadd.f32 %v763, 1e-05
          %v780 = vrsqrt.pop %v772
          %v781 = vrsqrt.pop %v773
          %v782 = vrsqrt.pop %v774
          %v783 = vrsqrt.pop %v775
          %v784 = vrsqrt.pop %v776
          %v785 = vrsqrt.pop %v777
          %v786 = vrsqrt.pop %v778
          %v787 = vrsqrt.pop %v779
          %v788 = vmul.f32 %v764, %v780
          %v789 = vmul.f32 %v765, %v781
          %v790 = vmul.f32 %v766, %v782
          %v791 = vmul.f32 %v767, %v783
          %v792 = vmul.f32 %v768, %v784
          %v793 = vmul.f32 %v769, %v785
          %v794 = vmul.f32 %v770, %v786
          %v795 = vmul.f32 %v771, %v787
          %796 = vst.msk [vmem:[#allocation4] sm:$0xff] %vm640, %v788
          %797 = vst.msk [vmem:[#allocation4 + $0x8] sm:$0xff] %vm640, %v789
          %798 = vst.msk [vmem:[#allocation4 + $0x10] sm:$0xff] %vm640, %v790
          %799 = vst.msk [vmem:[#allocation4 + $0x18] sm:$0xff] %vm640, %v791
          %800 = vst.msk [vmem:[#allocation4 + $0x20] sm:$0xff] %vm640, %v792
          %801 = vst.msk [vmem:[#allocation4 + $0x28] sm:$0xff] %vm640, %v793
          %802 = vst.msk [vmem:[#allocation4 + $0x30] sm:$0xff] %vm640, %v794
          %803 = vst.msk [vmem:[#allocation4 + $0x38] sm:$0xff] %vm640, %v795
          %v804 = vld [vmem:[%s3] sm:$0xff]
          %v805 = vld [vmem:[%s3 + $0x8] sm:$0xff]
          %v806 = vld [vmem:[%s3 + $0x10] sm:$0xff]
          %v807 = vld [vmem:[%s3 + $0x18] sm:$0xff]
          %v808 = vld [vmem:[%s3 + $0x20] sm:$0xff]
          %v809 = vld [vmem:[%s3 + $0x28] sm:$0xff]
          %v810 = vld [vmem:[%s3 + $0x30] sm:$0xff]
          %v811 = vld [vmem:[%s3 + $0x38] sm:$0xff]
          %v812 = vmul.f32 %v788, %v716
          %v813 = vmul.f32 %v789, %v717
          %v814 = vmul.f32 %v790, %v718
          %v815 = vmul.f32 %v791, %v719
          %v816 = vmul.f32 %v792, %v720
          %v817 = vmul.f32 %v793, %v721
          %v818 = vmul.f32 %v794, %v722
          %v819 = vmul.f32 %v795, %v723
          %v820 = vsub.f32 %v804, %v812
          %v821 = vsub.f32 %v805, %v813
          %v822 = vsub.f32 %v806, %v814
          %v823 = vsub.f32 %v807, %v815
          %v824 = vsub.f32 %v808, %v816
          %v825 = vsub.f32 %v809, %v817
          %v826 = vsub.f32 %v810, %v818
          %v827 = vsub.f32 %v811, %v819
          %828 = vst.msk [vmem:[#allocation5] sm:$0xff] %vm640, %v820
          %829 = vst.msk [vmem:[#allocation5 + $0x8] sm:$0xff] %vm640, %v821
          %830 = vst.msk [vmem:[#allocation5 + $0x10] sm:$0xff] %vm640, %v822
          %831 = vst.msk [vmem:[#allocation5 + $0x18] sm:$0xff] %vm640, %v823
          %832 = vst.msk [vmem:[#allocation5 + $0x20] sm:$0xff] %vm640, %v824
          %833 = vst.msk [vmem:[#allocation5 + $0x28] sm:$0xff] %vm640, %v825
          %834 = vst.msk [vmem:[#allocation5 + $0x30] sm:$0xff] %vm640, %v826
          %835 = vst.msk [vmem:[#allocation5 + $0x38] sm:$0xff] %vm640, %v827
        $region48: #{spec_encoder_forward.5} parent=39 // pred_fallthru
          _
      $region40: #{spec_encoder_forward.5} parent=35 // pred_fallthru
        _
      %p836 = scmp.eq.s32.totalorder %s19, 1
      // Predicated region
      $region49: #{spec_encoder_forward.5} parent=35 // pred_check
        %p837 = pneg %p836
      $region50: #{spec_encoder_forward.5} parent=35 // pred_check_branch
        %839 = sbr.rel (%p837) target = $region52
      $region51: #{spec_encoder_forward.5} parent=35 // pred_region
        %v840 = vld [vmem:[#allocation4] sm:$0xff]
        %v841 = vld [vmem:[#allocation4 + $0x8] sm:$0xff]
        %v842 = vld [vmem:[#allocation4 + $0x10] sm:$0xff]
        %v843 = vld [vmem:[#allocation4 + $0x18] sm:$0xff]
        %v844 = vld [vmem:[#allocation4 + $0x20] sm:$0xff]
        %v845 = vld [vmem:[#allocation4 + $0x28] sm:$0xff]
        %v846 = vld [vmem:[#allocation4 + $0x30] sm:$0xff]
        %v847 = vld [vmem:[#allocation4 + $0x38] sm:$0xff]
        %849 = vset.pattern.permute.xlu0 0
        %850 = vperm.xlu0 %849, %v840
        %v851 = vpop.permute.xlu0 %850
        %854 = vset.pattern.permute.xlu0 0
        %855 = vperm.xlu0 %854, %v841
        %v856 = vpop.permute.xlu0 %855
        %859 = vset.pattern.permute.xlu0 0
        %860 = vperm.xlu0 %859, %v842
        %v861 = vpop.permute.xlu0 %860
        %864 = vset.pattern.permute.xlu0 0
        %865 = vperm.xlu0 %864, %v843
        %v866 = vpop.permute.xlu0 %865
        %869 = vset.pattern.permute.xlu0 0
        %870 = vperm.xlu0 %869, %v844
        %v871 = vpop.permute.xlu0 %870
        %874 = vset.pattern.permute.xlu0 0
        %875 = vperm.xlu0 %874, %v845
        %v876 = vpop.permute.xlu0 %875
        %879 = vset.pattern.permute.xlu0 0
        %880 = vperm.xlu0 %879, %v846
        %v881 = vpop.permute.xlu0 %880
        %884 = vset.pattern.permute.xlu0 0
        %885 = vperm.xlu0 %884, %v847
        %v886 = vpop.permute.xlu0 %885
        %v888 = vmul.f32 %v544, %v851
        %v889 = vmul.f32 %v547, %v856
        %v890 = vmul.f32 %v552, %v861
        %v891 = vmul.f32 %v555, %v866
        %v892 = vmul.f32 %v560, %v871
        %v893 = vmul.f32 %v563, %v876
        %v894 = vmul.f32 %v568, %v881
        %v895 = vmul.f32 %v571, %v886
        %v896 = vld [vmem:[#allocation5] sm:$0xff]
        %v897 = vld [vmem:[#allocation5 + $0x8] sm:$0xff]
        %v898 = vld [vmem:[#allocation5 + $0x10] sm:$0xff]
        %v899 = vld [vmem:[#allocation5 + $0x18] sm:$0xff]
        %v900 = vld [vmem:[#allocation5 + $0x20] sm:$0xff]
        %v901 = vld [vmem:[#allocation5 + $0x28] sm:$0xff]
        %v902 = vld [vmem:[#allocation5 + $0x30] sm:$0xff]
        %v903 = vld [vmem:[#allocation5 + $0x38] sm:$0xff]
        %905 = vset.pattern.permute.xlu0 0
        %906 = vperm.xlu0 %905, %v896
        %v907 = vpop.permute.xlu0 %906
        %910 = vset.pattern.permute.xlu0 0
        %911 = vperm.xlu0 %910, %v897
        %v912 = vpop.permute.xlu0 %911
        %915 = vset.pattern.permute.xlu0 0
        %916 = vperm.xlu0 %915, %v898
        %v917 = vpop.permute.xlu0 %916
        %920 = vset.pattern.permute.xlu0 0
        %921 = vperm.xlu0 %920, %v899
        %v922 = vpop.permute.xlu0 %921
        %925 = vset.pattern.permute.xlu0 0
        %926 = vperm.xlu0 %925, %v900
        %v927 = vpop.permute.xlu0 %926
        %930 = vset.pattern.permute.xlu0 0
        %931 = vperm.xlu0 %930, %v901
        %v932 = vpop.permute.xlu0 %931
        %935 = vset.pattern.permute.xlu0 0
        %936 = vperm.xlu0 %935, %v902
        %v937 = vpop.permute.xlu0 %936
        %940 = vset.pattern.permute.xlu0 0
        %941 = vperm.xlu0 %940, %v903
        %v942 = vpop.permute.xlu0 %941
        %v944 = vadd.f32 %v888, %v907
        %v945 = vadd.f32 %v889, %v912
        %v946 = vadd.f32 %v890, %v917
        %v947 = vadd.f32 %v891, %v922
        %v948 = vadd.f32 %v892, %v927
        %v949 = vadd.f32 %v893, %v932
        %v950 = vadd.f32 %v894, %v937
        %v951 = vadd.f32 %v895, %v942
        %v952 = vmax.f32 %v944, 0.0
        %v953 = vmax.f32 %v945, 0.0
        %v954 = vmax.f32 %v946, 0.0
        %v955 = vmax.f32 %v947, 0.0
        %v956 = vmax.f32 %v948, 0.0
        %v957 = vmax.f32 %v949, 0.0
        %v958 = vmax.f32 %v950, 0.0
        %v959 = vmax.f32 %v951, 0.0
        %vm960 = vcmask 64512
        %961 = vst.msk [vmem:[%s208] sm:$0xff] %vm960, %v952
        %962 = vst.msk [vmem:[%s208 + $0x8] sm:$0xff] %vm960, %v953
        %963 = vst.msk [vmem:[%s208 + $0x10] sm:$0xff] %vm960, %v954
        %964 = vst.msk [vmem:[%s208 + $0x18] sm:$0xff] %vm960, %v955
        %965 = vst.msk [vmem:[%s208 + $0x20] sm:$0xff] %vm960, %v956
        %966 = vst.msk [vmem:[%s208 + $0x28] sm:$0xff] %vm960, %v957
        %967 = vst.msk [vmem:[%s208 + $0x30] sm:$0xff] %vm960, %v958
        %968 = vst.msk [vmem:[%s208 + $0x38] sm:$0xff] %vm960, %v959
      $region52: #{spec_encoder_forward.5} parent=35 // pred_fallthru
        _
      %s969 = smul.u32 %s20, %s19
      %p970 = scmp.lt.s32.totalorder %s969, 0
      %s971 = scalar_select %p970, %s969, 0
      %s972 = smul.addr %s971, 8
      %s973 = scalar_lea.vmem %s4, %s972
      // Predicated region
      $region53: #{spec_encoder_forward.5} parent=35 // pred_check
        %p974 = pneg %p136
      $region54: #{spec_encoder_forward.5} parent=35 // pred_check_branch
        %976 = sbr.rel (%p974) target = $region56
      $region55: #{spec_encoder_forward.5} parent=35 // pred_region
        %s977 = smul.u32 %s20, %s19
      $region56: #{spec_encoder_forward.5} parent=35 // pred_fallthru
        _
    $region36: #{spec_encoder_forward.5} parent=5 // pred_fallthru
      _
    %p978 = scmp.le.s32.totalorder 2, %s10
    // Predicated region
    $region57: #{spec_encoder_forward.5} parent=5 // pred_check
      %p979 = pneg %p978
    $region58: #{spec_encoder_forward.5} parent=5 // pred_check_branch
      %981 = sbr.rel (%p979) target = $region60
    $region59: #{spec_encoder_forward.5} parent=5 // pred_region
      %s982 = ssub.s32 %s10, 2
      // Predicated region
      $region61: #{spec_encoder_forward.5} parent=59 // pred_check
        %p983 = pneg %p142
      $region62: #{spec_encoder_forward.5} parent=59 // pred_check_branch
        %985 = sbr.rel (%p983) target = $region64
      $region63: #{spec_encoder_forward.5} parent=59 // pred_region
        %s986 = smul.u32 %s22, %s21
        %p987 = scmp.lt.s32.totalorder %s986, 0
        %s988 = scalar_select %p987, %s986, 0
        %s989 = smul.addr %s988, 8
        %s990 = scalar_lea.vmem %s4, %s989
      $region64: #{spec_encoder_forward.5} parent=59 // pred_fallthru
        _
    $region60: #{spec_encoder_forward.5} parent=5 // pred_fallthru
      _
  $region6: #{spec_encoder_forward.5} parent=0 // loop_footer
    %s14 = sadd.s32 1, %s10
  $region7: #{spec_encoder_forward.5} parent=0 // loop_footer_branch
    %9 = sbr.rel target = $region3
  $region8: #{spec_encoder_forward.5} parent=0 // loop_exit
    _

</llo_original>
